<compile_context>
chip_gen: v6e
topology: v6e:2x2x1
jax: 0.10.0
libtpu: 0.0.40
codegen_flags: <defaults>
</compile_context>

<pallas_src>
import functools

import jax
import jax.numpy as jnp
from jax import lax
from jax.experimental import pallas as pl
from jax.experimental.pallas import tpu as pltpu


# ------------------------------ fused kernel ------------------------------- #

def _fused_residual_attention_kernel(
    # inputs
    x_ref, pooled_ref, ctx_ref,
    wq_ref, wk_ref, wv_ref, wkb_ref, wvb_ref, wo_ref, bo_ref,
    # outputs
    o_ref,
    # scratch
    k_scr, v_scr, kbg_scr, vbg_scr, o_scr,
    *, heads, dim_head, scale, matmul_dtype):
  f32 = jnp.float32
  mm = matmul_dtype

  # --- per-batch K/V projections, computed once (q-tile 0) and cached -------
  @pl.when(pl.program_id(1) == 0)
  def _project_kv():
    ctx = ctx_ref[...].astype(mm)                      # (Nc, Dc)
    pooled = pooled_ref[...].astype(mm)                # (1, Dq)
    k_scr[...] = jnp.dot(ctx, wk_ref[...],
                         preferred_element_type=f32).astype(k_scr.dtype)
    v_scr[...] = jnp.dot(ctx, wv_ref[...],
                         preferred_element_type=f32).astype(v_scr.dtype)
    kbg_scr[...] = jnp.dot(pooled, wkb_ref[...],
                           preferred_element_type=f32).astype(kbg_scr.dtype)
    vbg_scr[...] = jnp.dot(pooled, wvb_ref[...],
                           preferred_element_type=f32).astype(vbg_scr.dtype)

  # --- Q projection for this (batch, q-tile); softmax scale folded in once --
  x = x_ref[...].astype(mm)                            # (TQ, Dq)
  q = jnp.dot(x, wq_ref[...], preferred_element_type=f32) * scale  # (TQ,inner)
  qm = q.astype(mm)

  km = k_scr[...]                                      # (Nc, inner), mm
  vm = v_scr[...]                                      # (Nc, inner), mm
  k_bg = kbg_scr[...].astype(f32)                      # (1, inner)
  v_bg = vbg_scr[...].astype(f32)                      # (1, inner)

  # Background logits: per-head row sums of q * k_bg (scale already in q).
  q_kbg = q * k_bg                                     # (TQ, inner) f32

  for h in range(heads):          # static unroll (heads small); each slice
    lo = h * dim_head             # below is consumed exactly once.
    hi = lo + dim_head
    q_h = qm[:, lo:hi]                                 # (TQ, d)
    k_h = km[:, lo:hi]                                 # (Nc, d)
    v_h = vm[:, lo:hi]                                 # (Nc, d)
    v_bg_h = v_bg[:, lo:hi]                            # (1, d)

    sim = lax.dot_general(q_h, k_h, (((1,), (1,)), ((), ())),
                          preferred_element_type=f32)  # (TQ, Nc)
    sim_bg = jnp.sum(q_kbg[:, lo:hi], axis=-1, keepdims=True)   # (TQ, 1)

    # Numerically-stable softmax over [cross tokens, background token]:
    # the background logit participates in the row max.
    m = jnp.maximum(jnp.max(sim, axis=-1, keepdims=True), sim_bg)
    p = jnp.exp(sim - m)                               # (TQ, Nc) f32
    p_bg = jnp.exp(sim_bg - m)                         # (TQ, 1)  f32
    l = jnp.sum(p, axis=-1, keepdims=True) + p_bg      # (TQ, 1)

    o_h = jnp.dot(p.astype(mm), v_h, preferred_element_type=f32)  # (TQ, d)
    o_h = o_h + p_bg * v_bg_h                          # background contribution
    o_h = o_h * pl.reciprocal(l)                       # exact (approx=False)
    o_scr[:, lo:hi] = o_h.astype(o_scr.dtype)          # lane slice of (TQ,inner)

  # --- single fused output projection: (TQ, inner) @ (inner, Dq) + bias -----
  out = jnp.dot(o_scr[...], wo_ref[...], preferred_element_type=f32)
  # Note: Dq < 128 (or not a multiple of 128) makes this a masked store slab;
  # fine for these shapes.
  o_ref[...] = (out + bo_ref[...].astype(f32)).astype(o_ref.dtype)


# --------------------------- module forward pass ---------------------------- #

def init_params(key, query_dim, context_dim, heads, dim_head, dtype=jnp.float32):
  inner = heads * dim_head
  ks = jax.random.split(key, 6)

  # nn.Linear stores (out, in); we store transposed (in, out) so x @ W works.
  def w(k, fan_in, fan_out):
    bound = 1.0 / (fan_in ** 0.5)
    return jax.random.uniform(k, (fan_in, fan_out), dtype, -bound, bound)

  return {
      "wq": w(ks[0], query_dim, inner),
      "wk": w(ks[1], context_dim, inner),
      "wv": w(ks[2], context_dim, inner),
      "wk_": w(ks[3], query_dim, inner),
      "wv_": w(ks[4], query_dim, inner),
      "wo": w(ks[5], inner, query_dim),
      "bo": jnp.zeros((query_dim,), dtype),
  }


def _pick_vmem_limit():
  """Per-generation scoped-VMEM limit (~85% of physical, capped at 110 MiB)."""
  try:
    cap = int(pltpu.get_tpu_info().vmem_capacity_bytes)
  except Exception:  # pragma: no cover - conservative fallback
    cap = 128 * 1024 * 1024
  return max(32 * 1024 * 1024, min(int(cap * 0.85), 110 * 1024 * 1024))


def residual_attention_forward(params, x, heads, dim_head, context=None,
                               q_tile=256, matmul_dtype=jnp.bfloat16):
  """Forward pass matching ResidualAttention.forward (mask=None, eval mode)."""
  B, N, Dq = x.shape
  inner = heads * dim_head
  scale = float(dim_head) ** (-0.5)
  ctx = x if context is None else context
  _, Nc, Dc = ctx.shape

  tq = min(q_tile, N)
  if N % tq != 0:
    tq = N  # TODO(synk): ragged last q-tile not handled; fall back to one tile
  n_qt = N // tq

  # Background token = mean over the FULL sequence.  Computed wrapper-side
  # (tiny B*N*Dq reduction) because the kernel only sees a TQ-row slab of x.
  pooled = jnp.mean(x.astype(jnp.float32), axis=1, keepdims=True)  # (B,1,Dq)

  mm = matmul_dtype
  # MXU is natively bf16 on v5e/v6e/v7x: keep the VMEM-resident weights in
  # bf16 (halves the one-time weight DMA and resident footprint).
  wq = params["wq"].astype(mm)
  wk = params["wk"].astype(mm)
  wv = params["wv"].astype(mm)
  wkb = params["wk_"].astype(mm)
  wvb = params["wv_"].astype(mm)
  wo = params["wo"].astype(mm)
  bo = params["bo"].reshape(1, Dq).astype(jnp.float32)

  kernel = functools.partial(
      _fused_residual_attention_kernel,
      heads=heads, dim_head=dim_head, scale=scale, matmul_dtype=mm)

  itemsize = x.dtype.itemsize
  w_bytes = 2 * (wq.size + wk.size + wv.size + wkb.size + wvb.size + wo.size)
  cost = pl.CostEstimate(
      flops=int(2 * B * N * Dq * inner            # q projection
                + 4 * B * Nc * Dc * inner         # k, v cross projections
                + 4 * B * Dq * inner              # k_bg, v_bg projections
                + 4 * B * N * (Nc + 1) * inner    # q@k^T and p@v (all heads)
                + 2 * B * N * inner * Dq),        # output projection
      transcendentals=B * heads * N * (Nc + 1),
      bytes_accessed=int(x.size * itemsize + pooled.size * 4
                         + ctx.size * itemsize + w_bytes + 4 * Dq
                         + B * N * Dq * itemsize),
  )

  def wspec():
    # Untiled, VMEM-resident weights: copied in once, single buffer (no
    # double-buffering of constant-index operands).
    return pl.BlockSpec(memory_space=pltpu.MemorySpace.VMEM)

  return pl.pallas_call(
      kernel,
      out_shape=jax.ShapeDtypeStruct((B, N, Dq), x.dtype),
      grid=(B, n_qt),
      in_specs=[
          pl.BlockSpec((None, tq, Dq), lambda b, t: (b, t, 0)),   # x q-tile
          pl.BlockSpec((None, 1, Dq), lambda b, t: (b, 0, 0)),    # pooled_x
          pl.BlockSpec((None, Nc, Dc), lambda b, t: (b, 0, 0)),   # context (per-b)
          wspec(), wspec(), wspec(),                              # wq, wk, wv
          wspec(), wspec(),                                       # wk_, wv_
          wspec(), wspec(),                                       # wo, bo
      ],
      out_specs=pl.BlockSpec((None, tq, Dq), lambda b, t: (b, t, 0)),
      scratch_shapes=[
          pltpu.VMEM((Nc, inner), mm),   # cached K (cross), per batch
          pltpu.VMEM((Nc, inner), mm),   # cached V (cross), per batch
          pltpu.VMEM((1, inner), mm),    # cached background k row
          pltpu.VMEM((1, inner), mm),    # cached background v row
          pltpu.VMEM((tq, inner), mm),   # per-head attention outputs
      ],
      compiler_params=pltpu.CompilerParams(
          # batch: independent -> megacore-shard; q-tile: sequential so the
          # per-batch K/V scratch cache (initialized at t == 0) stays valid.
          dimension_semantics=("parallel", "arbitrary"),
          vmem_limit_bytes=_pick_vmem_limit(),
      ),
      cost_estimate=cost,
  )(x, pooled, ctx, wq, wk, wv, wkb, wvb, wo, bo)


# ----------------------- pure-JAX reference (checking) ---------------------- #

def reference_forward(params, x, heads, dim_head, context=None):
  B, N, Dq = x.shape
  inner = heads * dim_head
  scale = dim_head ** (-0.5)
  ctx = x if context is None else context
  q = x @ params["wq"]
  pooled = jnp.mean(x, axis=1, keepdims=True)
  k = jnp.concatenate([ctx @ params["wk"], pooled @ params["wk_"]], axis=1)
  v = jnp.concatenate([ctx @ params["wv"], pooled @ params["wv_"]], axis=1)

  def split_heads(t):
    b, n, _ = t.shape
    return t.reshape(b, n, heads, dim_head).transpose(0, 2, 1, 3).reshape(
        b * heads, n, dim_head)

  qh, kh, vh = split_heads(q), split_heads(k), split_heads(v)
  sim = jnp.einsum("bid,bjd->bij", qh, kh) * scale
  attn = jax.nn.softmax(sim, axis=-1)
  out = jnp.einsum("bij,bjd->bid", attn, vh)
  out = out.reshape(B, heads, N, dim_head).transpose(0, 2, 1, 3).reshape(
      B, N, inner)
  return out @ params["wo"] + params["bo"]


if __name__ == "__main__":
  B, N, query_dim = 2, 8, 32
  heads, dim_head = 4, 8
  key = jax.random.PRNGKey(0)
  kx, kp, kc, kp2 = jax.random.split(key, 4)

  # Self-attention (context=None), the module default.
  x = jax.random.normal(kx, (B, N, query_dim), dtype=jnp.float32)
  params = init_params(kp, query_dim, query_dim, heads, dim_head)
  out = jax.block_until_ready(
      residual_attention_forward(params, x, heads, dim_head))
  ref = reference_forward(params, x, heads, dim_head)
  assert out.shape == (B, N, query_dim)
  err = float(jnp.max(jnp.abs(out - ref)))
  # Tolerance accounts for bf16 MXU operands (f32 accumulation).
  assert jnp.allclose(out, ref, atol=5e-2, rtol=5e-2), err

  # Cross-attention with an explicit context of different length / width.
  ctx_dim, Nc = 48, 5
  ctx = jax.random.normal(kc, (B, Nc, ctx_dim), dtype=jnp.float32)
  params2 = init_params(kp2, query_dim, ctx_dim, heads, dim_head)
  out2 = jax.block_until_ready(
      residual_attention_forward(params2, x, heads, dim_head, context=ctx))
  ref2 = reference_forward(params2, x, heads, dim_head, context=ctx)
  err2 = float(jnp.max(jnp.abs(out2 - ref2)))
  assert jnp.allclose(out2, ref2, atol=5e-2, rtol=5e-2), err2

  print("KERNEL_OK")
</pallas_src>

<mosaic_0001>
module attributes {stable_mosaic.version = 11 : i64} {
  func.func @_fused_residual_attention_kernel(%arg0: i32, %arg1: i32, %arg2: memref<1x8x32xf32, #tpu.memory_space<vmem>>, %arg3: memref<1x1x32xf32, #tpu.memory_space<vmem>>, %arg4: memref<1x8x32xf32, #tpu.memory_space<vmem>>, %arg5: memref<32x32xbf16, #tpu.memory_space<vmem>>, %arg6: memref<32x32xbf16, #tpu.memory_space<vmem>>, %arg7: memref<32x32xbf16, #tpu.memory_space<vmem>>, %arg8: memref<32x32xbf16, #tpu.memory_space<vmem>>, %arg9: memref<32x32xbf16, #tpu.memory_space<vmem>>, %arg10: memref<32x32xbf16, #tpu.memory_space<vmem>>, %arg11: memref<1x32xf32, #tpu.memory_space<vmem>>, %arg12: memref<1x8x32xf32, #tpu.memory_space<vmem>>, %arg13: memref<8x32xbf16, #tpu.memory_space<vmem>>, %arg14: memref<8x32xbf16, #tpu.memory_space<vmem>>, %arg15: memref<1x32xbf16, #tpu.memory_space<vmem>>, %arg16: memref<1x32xbf16, #tpu.memory_space<vmem>>, %arg17: memref<8x32xbf16, #tpu.memory_space<vmem>>) attributes {dimension_semantics = [#tpu.dimension_semantics<parallel>, #tpu.dimension_semantics<arbitrary>], iteration_bounds = array<i64: 2, 1>, scalar_prefetch = 0 : i64, scratch_operands = 5 : i64, tpu.core_type = #tpu.core_type<tc>, window_params = [{transform_indices = @transform_0, window_bounds = array<i64: 1, 8, 32>}, {transform_indices = @transform_1, window_bounds = array<i64: 1, 1, 32>}, {transform_indices = @transform_2, window_bounds = array<i64: 1, 8, 32>}, {pipeline_mode = #tpu.pipeline_mode<synchronous>, transform_indices = @transform_3, window_bounds = array<i64: 32, 32>}, {pipeline_mode = #tpu.pipeline_mode<synchronous>, transform_indices = @transform_4, window_bounds = array<i64: 32, 32>}, {pipeline_mode = #tpu.pipeline_mode<synchronous>, transform_indices = @transform_5, window_bounds = array<i64: 32, 32>}, {pipeline_mode = #tpu.pipeline_mode<synchronous>, transform_indices = @transform_6, window_bounds = array<i64: 32, 32>}, {pipeline_mode = #tpu.pipeline_mode<synchronous>, transform_indices = @transform_7, window_bounds = array<i64: 32, 32>}, {pipeline_mode = #tpu.pipeline_mode<synchronous>, transform_indices = @transform_8, window_bounds = array<i64: 32, 32>}, {pipeline_mode = #tpu.pipeline_mode<synchronous>, transform_indices = @transform_9, window_bounds = array<i64: 1, 32>}, {transform_indices = @transform_10, window_bounds = array<i64: 1, 8, 32>}]} {
    %c0_i32 = arith.constant 0 : i32
    %0 = arith.cmpi eq, %arg1, %c0_i32 : i32
    %1 = arith.extui %0 : i1 to i32
    %c0_i32_0 = arith.constant 0 : i32
    %2 = arith.cmpi ne, %1, %c0_i32_0 : i32
    scf.if %2 {
      %c0_49 = arith.constant 0 : index
      %c0_50 = arith.constant 0 : index
      %c0_51 = arith.constant 0 : index
      %148 = vector.load %arg4[%c0_49, %c0_50, %c0_51] : memref<1x8x32xf32, #tpu.memory_space<vmem>>, vector<1x8x32xf32>
      %149 = vector.shape_cast %148 : vector<1x8x32xf32> to vector<8x32xf32>
      %150 = arith.truncf %149 : vector<8x32xf32> to vector<8x32xbf16>
      %c0_52 = arith.constant 0 : index
      %c0_53 = arith.constant 0 : index
      %c0_54 = arith.constant 0 : index
      %151 = vector.load %arg3[%c0_52, %c0_53, %c0_54] : memref<1x1x32xf32, #tpu.memory_space<vmem>>, vector<1x1x32xf32>
      %152 = vector.shape_cast %151 : vector<1x1x32xf32> to vector<1x32xf32>
      %153 = arith.truncf %152 : vector<1x32xf32> to vector<1x32xbf16>
      %c0_55 = arith.constant 0 : index
      %c0_56 = arith.constant 0 : index
      %154 = vector.load %arg6[%c0_55, %c0_56] : memref<32x32xbf16, #tpu.memory_space<vmem>>, vector<32x32xbf16>
      %cst_57 = arith.constant dense<0.000000e+00> : vector<8x32xf32>
      %155 = tpu.matmul %150, %154, %cst_57 {dimension_numbers = #tpu.dot_dimension_numbers<[1], [0], [0], [1], [0, 0, 1, 1], [], []>} : vector<8x32xbf16>, vector<32x32xbf16>, vector<8x32xf32> -> vector<8x32xf32>
      %156 = arith.truncf %155 : vector<8x32xf32> to vector<8x32xbf16>
      %c0_58 = arith.constant 0 : index
      %c0_59 = arith.constant 0 : index
      %157 = vector.load %arg13[%c0_58, %c0_59] : memref<8x32xbf16, #tpu.memory_space<vmem>>, vector<8x32xbf16>
      tpu.vector_store %arg13[%c0_58, %c0_59], %156 {strides = array<i32>} : memref<8x32xbf16, #tpu.memory_space<vmem>>, vector<8x32xbf16>,
      %c0_60 = arith.constant 0 : index
      %c0_61 = arith.constant 0 : index
      %158 = vector.load %arg7[%c0_60, %c0_61] : memref<32x32xbf16, #tpu.memory_space<vmem>>, vector<32x32xbf16>
      %cst_62 = arith.constant dense<0.000000e+00> : vector<8x32xf32>
      %159 = tpu.matmul %150, %158, %cst_62 {dimension_numbers = #tpu.dot_dimension_numbers<[1], [0], [0], [1], [0, 0, 1, 1], [], []>} : vector<8x32xbf16>, vector<32x32xbf16>, vector<8x32xf32> -> vector<8x32xf32>
      %160 = arith.truncf %159 : vector<8x32xf32> to vector<8x32xbf16>
      %c0_63 = arith.constant 0 : index
      %c0_64 = arith.constant 0 : index
      %161 = vector.load %arg14[%c0_63, %c0_64] : memref<8x32xbf16, #tpu.memory_space<vmem>>, vector<8x32xbf16>
      tpu.vector_store %arg14[%c0_63, %c0_64], %160 {strides = array<i32>} : memref<8x32xbf16, #tpu.memory_space<vmem>>, vector<8x32xbf16>,
      %c0_65 = arith.constant 0 : index
      %c0_66 = arith.constant 0 : index
      %162 = vector.load %arg8[%c0_65, %c0_66] : memref<32x32xbf16, #tpu.memory_space<vmem>>, vector<32x32xbf16>
      %cst_67 = arith.constant dense<0.000000e+00> : vector<1x32xf32>
      %163 = tpu.matmul %153, %162, %cst_67 {dimension_numbers = #tpu.dot_dimension_numbers<[1], [0], [0], [1], [0, 0, 1, 1], [], []>} : vector<1x32xbf16>, vector<32x32xbf16>, vector<1x32xf32> -> vector<1x32xf32>
      %164 = arith.truncf %163 : vector<1x32xf32> to vector<1x32xbf16>
      %c0_68 = arith.constant 0 : index
      %c0_69 = arith.constant 0 : index
      %165 = vector.load %arg15[%c0_68, %c0_69] : memref<1x32xbf16, #tpu.memory_space<vmem>>, vector<1x32xbf16>
      tpu.vector_store %arg15[%c0_68, %c0_69], %164 {strides = array<i32>} : memref<1x32xbf16, #tpu.memory_space<vmem>>, vector<1x32xbf16>,
      %c0_70 = arith.constant 0 : index
      %c0_71 = arith.constant 0 : index
      %166 = vector.load %arg9[%c0_70, %c0_71] : memref<32x32xbf16, #tpu.memory_space<vmem>>, vector<32x32xbf16>
      %cst_72 = arith.constant dense<0.000000e+00> : vector<1x32xf32>
      %167 = tpu.matmul %153, %166, %cst_72 {dimension_numbers = #tpu.dot_dimension_numbers<[1], [0], [0], [1], [0, 0, 1, 1], [], []>} : vector<1x32xbf16>, vector<32x32xbf16>, vector<1x32xf32> -> vector<1x32xf32>
      %168 = arith.truncf %167 : vector<1x32xf32> to vector<1x32xbf16>
      %c0_73 = arith.constant 0 : index
      %c0_74 = arith.constant 0 : index
      %169 = vector.load %arg16[%c0_73, %c0_74] : memref<1x32xbf16, #tpu.memory_space<vmem>>, vector<1x32xbf16>
      tpu.vector_store %arg16[%c0_73, %c0_74], %168 {strides = array<i32>} : memref<1x32xbf16, #tpu.memory_space<vmem>>, vector<1x32xbf16>,
    } else {
    }
    %c0 = arith.constant 0 : index
    %c0_1 = arith.constant 0 : index
    %c0_2 = arith.constant 0 : index
    %3 = vector.load %arg2[%c0, %c0_1, %c0_2] : memref<1x8x32xf32, #tpu.memory_space<vmem>>, vector<1x8x32xf32>
    %4 = vector.shape_cast %3 : vector<1x8x32xf32> to vector<8x32xf32>
    %5 = arith.truncf %4 : vector<8x32xf32> to vector<8x32xbf16>
    %c0_3 = arith.constant 0 : index
    %c0_4 = arith.constant 0 : index
    %6 = vector.load %arg5[%c0_3, %c0_4] : memref<32x32xbf16, #tpu.memory_space<vmem>>, vector<32x32xbf16>
    %cst = arith.constant dense<0.000000e+00> : vector<8x32xf32>
    %7 = tpu.matmul %5, %6, %cst {dimension_numbers = #tpu.dot_dimension_numbers<[1], [0], [0], [1], [0, 0, 1, 1], [], []>} : vector<8x32xbf16>, vector<32x32xbf16>, vector<8x32xf32> -> vector<8x32xf32>
    %cst_5 = arith.constant 0.353553385 : f32
    %8 = vector.broadcast %cst_5 : f32 to vector<8x32xf32>
    %9 = arith.mulf %7, %8 : vector<8x32xf32>
    %10 = arith.truncf %9 : vector<8x32xf32> to vector<8x32xbf16>
    %c0_6 = arith.constant 0 : index
    %c0_7 = arith.constant 0 : index
    %11 = vector.load %arg13[%c0_6, %c0_7] : memref<8x32xbf16, #tpu.memory_space<vmem>>, vector<8x32xbf16>
    %c0_8 = arith.constant 0 : index
    %c0_9 = arith.constant 0 : index
    %12 = vector.load %arg14[%c0_8, %c0_9] : memref<8x32xbf16, #tpu.memory_space<vmem>>, vector<8x32xbf16>
    %c0_10 = arith.constant 0 : index
    %c0_11 = arith.constant 0 : index
    %13 = vector.load %arg15[%c0_10, %c0_11] : memref<1x32xbf16, #tpu.memory_space<vmem>>, vector<1x32xbf16>
    %14 = arith.extf %13 : vector<1x32xbf16> to vector<1x32xf32>
    %c0_12 = arith.constant 0 : index
    %c0_13 = arith.constant 0 : index
    %15 = vector.load %arg16[%c0_12, %c0_13] : memref<1x32xbf16, #tpu.memory_space<vmem>>, vector<1x32xbf16>
    %16 = arith.extf %15 : vector<1x32xbf16> to vector<1x32xf32>
    %17 = vector.broadcast %14 : vector<1x32xf32> to vector<8x32xf32>
    %18 = arith.mulf %9, %17 : vector<8x32xf32>
    %19 = vector.extract_strided_slice %10 {offsets = [0, 0], sizes = [8, 8], strides = [1, 1]} : vector<8x32xbf16> to vector<8x8xbf16>
    %20 = vector.extract_strided_slice %11 {offsets = [0, 0], sizes = [8, 8], strides = [1, 1]} : vector<8x32xbf16> to vector<8x8xbf16>
    %21 = vector.extract_strided_slice %12 {offsets = [0, 0], sizes = [8, 8], strides = [1, 1]} : vector<8x32xbf16> to vector<8x8xbf16>
    %22 = vector.extract_strided_slice %16 {offsets = [0, 0], sizes = [1, 8], strides = [1, 1]} : vector<1x32xf32> to vector<1x8xf32>
    %cst_14 = arith.constant dense<0.000000e+00> : vector<8x8xf32>
    %23 = tpu.matmul %19, %20, %cst_14 {dimension_numbers = #tpu.dot_dimension_numbers<[1], [1], [0], [0], [0, 0, 1, 0], [], []>} : vector<8x8xbf16>, vector<8x8xbf16>, vector<8x8xf32> -> vector<8x8xf32>
    %24 = vector.extract_strided_slice %18 {offsets = [0, 0], sizes = [8, 8], strides = [1, 1]} : vector<8x32xf32> to vector<8x8xf32>
    %cst_15 = arith.constant dense<0.000000e+00> : vector<8xf32>
    %25 = vector.multi_reduction <add>, %24, %cst_15 [1] : vector<8x8xf32> to vector<8xf32>
    %26 = vector.shape_cast %25 : vector<8xf32> to vector<8x1xf32>
    %cst_16 = arith.constant dense<0xFF800000> : vector<8xf32>
    %27 = vector.multi_reduction <maximumf>, %23, %cst_16 [1] : vector<8x8xf32> to vector<8xf32>
    %28 = vector.shape_cast %27 : vector<8xf32> to vector<8x1xf32>
    %29 = arith.maximumf %28, %26 : vector<8x1xf32>
    %30 = vector.broadcast %29 : vector<8x1xf32> to vector<8x8xf32>
    %31 = arith.subf %23, %30 : vector<8x8xf32>
    %32 = math.exp %31 : vector<8x8xf32>
    %33 = arith.subf %26, %29 : vector<8x1xf32>
    %34 = math.exp %33 : vector<8x1xf32>
    %cst_17 = arith.constant dense<0.000000e+00> : vector<8xf32>
    %35 = vector.multi_reduction <add>, %32, %cst_17 [1] : vector<8x8xf32> to vector<8xf32>
    %36 = vector.shape_cast %35 : vector<8xf32> to vector<8x1xf32>
    %37 = arith.addf %36, %34 : vector<8x1xf32>
    %38 = arith.truncf %32 : vector<8x8xf32> to vector<8x8xbf16>
    %cst_18 = arith.constant dense<0.000000e+00> : vector<8x8xf32>
    %39 = tpu.matmul %38, %21, %cst_18 {dimension_numbers = #tpu.dot_dimension_numbers<[1], [0], [0], [1], [0, 0, 1, 1], [], []>} : vector<8x8xbf16>, vector<8x8xbf16>, vector<8x8xf32> -> vector<8x8xf32>
    %40 = vector.broadcast %34 : vector<8x1xf32> to vector<8x8xf32>
    %41 = vector.broadcast %22 : vector<1x8xf32> to vector<8x8xf32>
    %42 = arith.mulf %40, %41 : vector<8x8xf32>
    %43 = arith.addf %39, %42 : vector<8x8xf32>
    %44 = tpu.reciprocal %37 : vector<8x1xf32> -> vector<8x1xf32>
    %45 = vector.broadcast %44 : vector<8x1xf32> to vector<8x8xf32>
    %46 = arith.mulf %43, %45 : vector<8x8xf32>
    %47 = arith.truncf %46 : vector<8x8xf32> to vector<8x8xbf16>
    %c0_19 = arith.constant 0 : index
    %c0_20 = arith.constant 0 : index
    %48 = vector.load %arg17[%c0_19, %c0_20] : memref<8x32xbf16, #tpu.memory_space<vmem>>, vector<8x8xbf16>
    tpu.vector_store %arg17[%c0_19, %c0_20], %47 {strides = array<i32>} : memref<8x32xbf16, #tpu.memory_space<vmem>>, vector<8x8xbf16>,
    %49 = vector.extract_strided_slice %10 {offsets = [0, 8], sizes = [8, 8], strides = [1, 1]} : vector<8x32xbf16> to vector<8x8xbf16>
    %50 = vector.extract_strided_slice %11 {offsets = [0, 8], sizes = [8, 8], strides = [1, 1]} : vector<8x32xbf16> to vector<8x8xbf16>
    %51 = vector.extract_strided_slice %12 {offsets = [0, 8], sizes = [8, 8], strides = [1, 1]} : vector<8x32xbf16> to vector<8x8xbf16>
    %52 = vector.extract_strided_slice %16 {offsets = [0, 8], sizes = [1, 8], strides = [1, 1]} : vector<1x32xf32> to vector<1x8xf32>
    %cst_21 = arith.constant dense<0.000000e+00> : vector<8x8xf32>
    %53 = tpu.matmul %49, %50, %cst_21 {dimension_numbers = #tpu.dot_dimension_numbers<[1], [1], [0], [0], [0, 0, 1, 0], [], []>} : vector<8x8xbf16>, vector<8x8xbf16>, vector<8x8xf32> -> vector<8x8xf32>
    %54 = vector.extract_strided_slice %18 {offsets = [0, 8], sizes = [8, 8], strides = [1, 1]} : vector<8x32xf32> to vector<8x8xf32>
    %cst_22 = arith.constant dense<0.000000e+00> : vector<8xf32>
    %55 = vector.multi_reduction <add>, %54, %cst_22 [1] : vector<8x8xf32> to vector<8xf32>
    %56 = vector.shape_cast %55 : vector<8xf32> to vector<8x1xf32>
    %cst_23 = arith.constant dense<0xFF800000> : vector<8xf32>
    %57 = vector.multi_reduction <maximumf>, %53, %cst_23 [1] : vector<8x8xf32> to vector<8xf32>
    %58 = vector.shape_cast %57 : vector<8xf32> to vector<8x1xf32>
    %59 = arith.maximumf %58, %56 : vector<8x1xf32>
    %60 = vector.broadcast %59 : vector<8x1xf32> to vector<8x8xf32>
    %61 = arith.subf %53, %60 : vector<8x8xf32>
    %62 = math.exp %61 : vector<8x8xf32>
    %63 = arith.subf %56, %59 : vector<8x1xf32>
    %64 = math.exp %63 : vector<8x1xf32>
    %cst_24 = arith.constant dense<0.000000e+00> : vector<8xf32>
    %65 = vector.multi_reduction <add>, %62, %cst_24 [1] : vector<8x8xf32> to vector<8xf32>
    %66 = vector.shape_cast %65 : vector<8xf32> to vector<8x1xf32>
    %67 = arith.addf %66, %64 : vector<8x1xf32>
    %68 = arith.truncf %62 : vector<8x8xf32> to vector<8x8xbf16>
    %cst_25 = arith.constant dense<0.000000e+00> : vector<8x8xf32>
    %69 = tpu.matmul %68, %51, %cst_25 {dimension_numbers = #tpu.dot_dimension_numbers<[1], [0], [0], [1], [0, 0, 1, 1], [], []>} : vector<8x8xbf16>, vector<8x8xbf16>, vector<8x8xf32> -> vector<8x8xf32>
    %70 = vector.broadcast %64 : vector<8x1xf32> to vector<8x8xf32>
    %71 = vector.broadcast %52 : vector<1x8xf32> to vector<8x8xf32>
    %72 = arith.mulf %70, %71 : vector<8x8xf32>
    %73 = arith.addf %69, %72 : vector<8x8xf32>
    %74 = tpu.reciprocal %67 : vector<8x1xf32> -> vector<8x1xf32>
    %75 = vector.broadcast %74 : vector<8x1xf32> to vector<8x8xf32>
    %76 = arith.mulf %73, %75 : vector<8x8xf32>
    %77 = arith.truncf %76 : vector<8x8xf32> to vector<8x8xbf16>
    %c0_26 = arith.constant 0 : index
    %c8 = arith.constant 8 : index
    %78 = vector.load %arg17[%c0_26, %c8] : memref<8x32xbf16, #tpu.memory_space<vmem>>, vector<8x8xbf16>
    tpu.vector_store %arg17[%c0_26, %c8], %77 {strides = array<i32>} : memref<8x32xbf16, #tpu.memory_space<vmem>>, vector<8x8xbf16>,
    %79 = vector.extract_strided_slice %10 {offsets = [0, 16], sizes = [8, 8], strides = [1, 1]} : vector<8x32xbf16> to vector<8x8xbf16>
    %80 = vector.extract_strided_slice %11 {offsets = [0, 16], sizes = [8, 8], strides = [1, 1]} : vector<8x32xbf16> to vector<8x8xbf16>
    %81 = vector.extract_strided_slice %12 {offsets = [0, 16], sizes = [8, 8], strides = [1, 1]} : vector<8x32xbf16> to vector<8x8xbf16>
    %82 = vector.extract_strided_slice %16 {offsets = [0, 16], sizes = [1, 8], strides = [1, 1]} : vector<1x32xf32> to vector<1x8xf32>
    %cst_27 = arith.constant dense<0.000000e+00> : vector<8x8xf32>
    %83 = tpu.matmul %79, %80, %cst_27 {dimension_numbers = #tpu.dot_dimension_numbers<[1], [1], [0], [0], [0, 0, 1, 0], [], []>} : vector<8x8xbf16>, vector<8x8xbf16>, vector<8x8xf32> -> vector<8x8xf32>
    %84 = vector.extract_strided_slice %18 {offsets = [0, 16], sizes = [8, 8], strides = [1, 1]} : vector<8x32xf32> to vector<8x8xf32>
    %cst_28 = arith.constant dense<0.000000e+00> : vector<8xf32>
    %85 = vector.multi_reduction <add>, %84, %cst_28 [1] : vector<8x8xf32> to vector<8xf32>
    %86 = vector.shape_cast %85 : vector<8xf32> to vector<8x1xf32>
    %cst_29 = arith.constant dense<0xFF800000> : vector<8xf32>
    %87 = vector.multi_reduction <maximumf>, %83, %cst_29 [1] : vector<8x8xf32> to vector<8xf32>
    %88 = vector.shape_cast %87 : vector<8xf32> to vector<8x1xf32>
    %89 = arith.maximumf %88, %86 : vector<8x1xf32>
    %90 = vector.broadcast %89 : vector<8x1xf32> to vector<8x8xf32>
    %91 = arith.subf %83, %90 : vector<8x8xf32>
    %92 = math.exp %91 : vector<8x8xf32>
    %93 = arith.subf %86, %89 : vector<8x1xf32>
    %94 = math.exp %93 : vector<8x1xf32>
    %cst_30 = arith.constant dense<0.000000e+00> : vector<8xf32>
    %95 = vector.multi_reduction <add>, %92, %cst_30 [1] : vector<8x8xf32> to vector<8xf32>
    %96 = vector.shape_cast %95 : vector<8xf32> to vector<8x1xf32>
    %97 = arith.addf %96, %94 : vector<8x1xf32>
    %98 = arith.truncf %92 : vector<8x8xf32> to vector<8x8xbf16>
    %cst_31 = arith.constant dense<0.000000e+00> : vector<8x8xf32>
    %99 = tpu.matmul %98, %81, %cst_31 {dimension_numbers = #tpu.dot_dimension_numbers<[1], [0], [0], [1], [0, 0, 1, 1], [], []>} : vector<8x8xbf16>, vector<8x8xbf16>, vector<8x8xf32> -> vector<8x8xf32>
    %100 = vector.broadcast %94 : vector<8x1xf32> to vector<8x8xf32>
    %101 = vector.broadcast %82 : vector<1x8xf32> to vector<8x8xf32>
    %102 = arith.mulf %100, %101 : vector<8x8xf32>
    %103 = arith.addf %99, %102 : vector<8x8xf32>
    %104 = tpu.reciprocal %97 : vector<8x1xf32> -> vector<8x1xf32>
    %105 = vector.broadcast %104 : vector<8x1xf32> to vector<8x8xf32>
    %106 = arith.mulf %103, %105 : vector<8x8xf32>
    %107 = arith.truncf %106 : vector<8x8xf32> to vector<8x8xbf16>
    %c0_32 = arith.constant 0 : index
    %c16 = arith.constant 16 : index
    %108 = vector.load %arg17[%c0_32, %c16] : memref<8x32xbf16, #tpu.memory_space<vmem>>, vector<8x8xbf16>
    tpu.vector_store %arg17[%c0_32, %c16], %107 {strides = array<i32>} : memref<8x32xbf16, #tpu.memory_space<vmem>>, vector<8x8xbf16>,
    %109 = vector.extract_strided_slice %10 {offsets = [0, 24], sizes = [8, 8], strides = [1, 1]} : vector<8x32xbf16> to vector<8x8xbf16>
    %110 = vector.extract_strided_slice %11 {offsets = [0, 24], sizes = [8, 8], strides = [1, 1]} : vector<8x32xbf16> to vector<8x8xbf16>
    %111 = vector.extract_strided_slice %12 {offsets = [0, 24], sizes = [8, 8], strides = [1, 1]} : vector<8x32xbf16> to vector<8x8xbf16>
    %112 = vector.extract_strided_slice %16 {offsets = [0, 24], sizes = [1, 8], strides = [1, 1]} : vector<1x32xf32> to vector<1x8xf32>
    %cst_33 = arith.constant dense<0.000000e+00> : vector<8x8xf32>
    %113 = tpu.matmul %109, %110, %cst_33 {dimension_numbers = #tpu.dot_dimension_numbers<[1], [1], [0], [0], [0, 0, 1, 0], [], []>} : vector<8x8xbf16>, vector<8x8xbf16>, vector<8x8xf32> -> vector<8x8xf32>
    %114 = vector.extract_strided_slice %18 {offsets = [0, 24], sizes = [8, 8], strides = [1, 1]} : vector<8x32xf32> to vector<8x8xf32>
    %cst_34 = arith.constant dense<0.000000e+00> : vector<8xf32>
    %115 = vector.multi_reduction <add>, %114, %cst_34 [1] : vector<8x8xf32> to vector<8xf32>
    %116 = vector.shape_cast %115 : vector<8xf32> to vector<8x1xf32>
    %cst_35 = arith.constant dense<0xFF800000> : vector<8xf32>
    %117 = vector.multi_reduction <maximumf>, %113, %cst_35 [1] : vector<8x8xf32> to vector<8xf32>
    %118 = vector.shape_cast %117 : vector<8xf32> to vector<8x1xf32>
    %119 = arith.maximumf %118, %116 : vector<8x1xf32>
    %120 = vector.broadcast %119 : vector<8x1xf32> to vector<8x8xf32>
    %121 = arith.subf %113, %120 : vector<8x8xf32>
    %122 = math.exp %121 : vector<8x8xf32>
    %123 = arith.subf %116, %119 : vector<8x1xf32>
    %124 = math.exp %123 : vector<8x1xf32>
    %cst_36 = arith.constant dense<0.000000e+00> : vector<8xf32>
    %125 = vector.multi_reduction <add>, %122, %cst_36 [1] : vector<8x8xf32> to vector<8xf32>
    %126 = vector.shape_cast %125 : vector<8xf32> to vector<8x1xf32>
    %127 = arith.addf %126, %124 : vector<8x1xf32>
    %128 = arith.truncf %122 : vector<8x8xf32> to vector<8x8xbf16>
    %cst_37 = arith.constant dense<0.000000e+00> : vector<8x8xf32>
    %129 = tpu.matmul %128, %111, %cst_37 {dimension_numbers = #tpu.dot_dimension_numbers<[1], [0], [0], [1], [0, 0, 1, 1], [], []>} : vector<8x8xbf16>, vector<8x8xbf16>, vector<8x8xf32> -> vector<8x8xf32>
    %130 = vector.broadcast %124 : vector<8x1xf32> to vector<8x8xf32>
    %131 = vector.broadcast %112 : vector<1x8xf32> to vector<8x8xf32>
    %132 = arith.mulf %130, %131 : vector<8x8xf32>
    %133 = arith.addf %129, %132 : vector<8x8xf32>
    %134 = tpu.reciprocal %127 : vector<8x1xf32> -> vector<8x1xf32>
    %135 = vector.broadcast %134 : vector<8x1xf32> to vector<8x8xf32>
    %136 = arith.mulf %133, %135 : vector<8x8xf32>
    %137 = arith.truncf %136 : vector<8x8xf32> to vector<8x8xbf16>
    %c0_38 = arith.constant 0 : index
    %c24 = arith.constant 24 : index
    %138 = vector.load %arg17[%c0_38, %c24] : memref<8x32xbf16, #tpu.memory_space<vmem>>, vector<8x8xbf16>
    tpu.vector_store %arg17[%c0_38, %c24], %137 {strides = array<i32>} : memref<8x32xbf16, #tpu.memory_space<vmem>>, vector<8x8xbf16>,
    %c0_39 = arith.constant 0 : index
    %c0_40 = arith.constant 0 : index
    %139 = vector.load %arg17[%c0_39, %c0_40] : memref<8x32xbf16, #tpu.memory_space<vmem>>, vector<8x32xbf16>
    %c0_41 = arith.constant 0 : index
    %c0_42 = arith.constant 0 : index
    %140 = vector.load %arg10[%c0_41, %c0_42] : memref<32x32xbf16, #tpu.memory_space<vmem>>, vector<32x32xbf16>
    %cst_43 = arith.constant dense<0.000000e+00> : vector<8x32xf32>
    %141 = tpu.matmul %139, %140, %cst_43 {dimension_numbers = #tpu.dot_dimension_numbers<[1], [0], [0], [1], [0, 0, 1, 1], [], []>} : vector<8x32xbf16>, vector<32x32xbf16>, vector<8x32xf32> -> vector<8x32xf32>
    %c0_44 = arith.constant 0 : index
    %c0_45 = arith.constant 0 : index
    %142 = vector.load %arg11[%c0_44, %c0_45] : memref<1x32xf32, #tpu.memory_space<vmem>>, vector<1x32xf32>
    %143 = vector.broadcast %142 : vector<1x32xf32> to vector<8x32xf32>
    %144 = arith.addf %141, %143 : vector<8x32xf32>
    %c0_46 = arith.constant 0 : index
    %c0_47 = arith.constant 0 : index
    %c0_48 = arith.constant 0 : index
    %145 = vector.load %arg12[%c0_46, %c0_47, %c0_48] : memref<1x8x32xf32, #tpu.memory_space<vmem>>, vector<1x8x32xf32>
    %146 = vector.shape_cast %145 : vector<1x8x32xf32> to vector<8x32xf32>
    %147 = vector.shape_cast %144 : vector<8x32xf32> to vector<1x8x32xf32>
    tpu.vector_store %arg12[%c0_46, %c0_47, %c0_48], %147 {strides = array<i32>} : memref<1x8x32xf32, #tpu.memory_space<vmem>>, vector<1x8x32xf32>,
    return
  }
  func.func @transform_0(%arg0: i32, %arg1: i32) -> (i32, i32, i32) {
    %c0_i32 = arith.constant 0 : i32
    %c0_i32_0 = arith.constant 0 : i32
    return %arg0, %arg1, %c0_i32 : i32, i32, i32
  }
  func.func @transform_1(%arg0: i32, %arg1: i32) -> (i32, i32, i32) {
    %c0_i32 = arith.constant 0 : i32
    %c0_i32_0 = arith.constant 0 : i32
    %c0_i32_1 = arith.constant 0 : i32
    return %arg0, %c0_i32, %c0_i32_0 : i32, i32, i32
  }
  func.func @transform_2(%arg0: i32, %arg1: i32) -> (i32, i32, i32) {
    %c0_i32 = arith.constant 0 : i32
    %c0_i32_0 = arith.constant 0 : i32
    %c0_i32_1 = arith.constant 0 : i32
    return %arg0, %c0_i32, %c0_i32_0 : i32, i32, i32
  }
  func.func @transform_3(%arg0: i32, %arg1: i32) -> (i32, i32) {
    %c0_i32 = arith.constant 0 : i32
    %c0_i32_0 = arith.constant 0 : i32
    %c0_i32_1 = arith.constant 0 : i32
    return %c0_i32, %c0_i32_0 : i32, i32
  }
  func.func @transform_4(%arg0: i32, %arg1: i32) -> (i32, i32) {
    %c0_i32 = arith.constant 0 : i32
    %c0_i32_0 = arith.constant 0 : i32
    %c0_i32_1 = arith.constant 0 : i32
    return %c0_i32, %c0_i32_0 : i32, i32
  }
  func.func @transform_5(%arg0: i32, %arg1: i32) -> (i32, i32) {
    %c0_i32 = arith.constant 0 : i32
    %c0_i32_0 = arith.constant 0 : i32
    %c0_i32_1 = arith.constant 0 : i32
    return %c0_i32, %c0_i32_0 : i32, i32
  }
  func.func @transform_6(%arg0: i32, %arg1: i32) -> (i32, i32) {
    %c0_i32 = arith.constant 0 : i32
    %c0_i32_0 = arith.constant 0 : i32
    %c0_i32_1 = arith.constant 0 : i32
    return %c0_i32, %c0_i32_0 : i32, i32
  }
  func.func @transform_7(%arg0: i32, %arg1: i32) -> (i32, i32) {
    %c0_i32 = arith.constant 0 : i32
    %c0_i32_0 = arith.constant 0 : i32
    %c0_i32_1 = arith.constant 0 : i32
    return %c0_i32, %c0_i32_0 : i32, i32
  }
  func.func @transform_8(%arg0: i32, %arg1: i32) -> (i32, i32) {
    %c0_i32 = arith.constant 0 : i32
    %c0_i32_0 = arith.constant 0 : i32
    %c0_i32_1 = arith.constant 0 : i32
    return %c0_i32, %c0_i32_0 : i32, i32
  }
  func.func @transform_9(%arg0: i32, %arg1: i32) -> (i32, i32) {
    %c0_i32 = arith.constant 0 : i32
    %c0_i32_0 = arith.constant 0 : i32
    %c0_i32_1 = arith.constant 0 : i32
    return %c0_i32, %c0_i32_0 : i32, i32
  }
  func.func @transform_10(%arg0: i32, %arg1: i32) -> (i32, i32, i32) {
    %c0_i32 = arith.constant 0 : i32
    %c0_i32_0 = arith.constant 0 : i32
    return %arg0, %arg1, %c0_i32 : i32, i32, i32
  }
}

</mosaic_0001>

<llo_original>
// kernel: tpu_custom_call.1
$region0: #{tpu_custom_call.1}
  #allocation0 [shape = 'u32[]', space=smem, size = 0x4, offset = 0x4, fixed_abs, tag = 'smem constant byte address 0x4 - core index']
  #allocation1 [shape = 'u32[144,128]{1,0:T(1,128)}', space=vmem, size = 0x12000, scoped, tag = 'internal scratch']
  #allocation2 [shape = 'bf16[8,32]{1,0:T(8,128)(2,1)}', space=vmem, size = 0x800, scoped, tag = 'scratch operand']
  #allocation3 [shape = 'bf16[8,32]{1,0:T(8,128)(2,1)}', space=vmem, size = 0x800, scoped, tag = 'scratch operand']
  #allocation4 [shape = 'bf16[1,32]{1,0:T(2,128)(2,1)}', space=vmem, size = 0x200, scoped, tag = 'scratch operand']
  #allocation5 [shape = 'bf16[1,32]{1,0:T(2,128)(2,1)}', space=vmem, size = 0x200, scoped, tag = 'scratch operand']
  #allocation6 [shape = 'bf16[8,32]{1,0:T(8,128)(2,1)}', space=vmem, size = 0x800, scoped, tag = 'scratch operand']
  %s0 = inlined_call_operand.hbm [shape: f32[2,8,32], index: 0, kind: input, shape index: {}]
  %s1 = inlined_call_operand.hbm [shape: f32[2,1,32], index: 1, kind: input, shape index: {}]
  %s2 = inlined_call_operand.hbm [shape: f32[2,8,32], index: 2, kind: input, shape index: {}]
  %s3 = inlined_call_operand.hbm [shape: bf16[32,32], index: 3, kind: input, shape index: {}]
  %s4 = inlined_call_operand.hbm [shape: bf16[32,32], index: 4, kind: input, shape index: {}]
  %s5 = inlined_call_operand.hbm [shape: bf16[32,32], index: 5, kind: input, shape index: {}]
  %s6 = inlined_call_operand.hbm [shape: bf16[32,32], index: 6, kind: input, shape index: {}]
  %s7 = inlined_call_operand.hbm [shape: bf16[32,32], index: 7, kind: input, shape index: {}]
  %s8 = inlined_call_operand.hbm [shape: bf16[32,32], index: 8, kind: input, shape index: {}]
  %s9 = inlined_call_operand.vmem [shape: f32[1,32], index: 9, kind: input, shape index: {}]
  %s10 = inlined_call_operand.hbm [shape: f32[2,8,32], index: 10, kind: output, shape index: {}]
  %s11 = sld [smem:[#allocation0]]
  $region113: #{tpu_custom_call.1} parent=0
    _
  %s13 = ssub.s32 1, %s11
  %s14 = scalar_select 0, %s13, %s11
  $region1: #{tpu_custom_call.1} parent=0
    #allocation7 [shape = 'u8[8192]{0}', space=vmem, size = 0x2000, scoped, tag = 'input window, operand 0']
    #allocation8 [shape = 's32[2]{0}', space=sflag, size = 0x8, scoped, tag = 'scoped memory for tpu_custom_call.1']
    #allocation9 [shape = 's32[2]{0}', space=sflag, size = 0x8, scoped, tag = 'scoped memory for tpu_custom_call.1']
    #allocation10 [shape = 'u8[1024]{0}', space=vmem, size = 0x400, scoped, tag = 'input window, operand 1']
    #allocation11 [shape = 's32[2]{0}', space=sflag, size = 0x8, scoped, tag = 'scoped memory for tpu_custom_call.1']
    #allocation12 [shape = 'u8[8192]{0}', space=vmem, size = 0x2000, scoped, tag = 'input window, operand 2']
    #allocation13 [shape = 'u8[8192]{0}', space=vmem, size = 0x2000, scoped, tag = 'input window, operand 3, single buffered']
    #allocation14 [shape = 's32[1]{0}', space=sflag, size = 0x4, scoped, tag = 'scoped memory for tpu_custom_call.1']
    #allocation15 [shape = 'u8[8192]{0}', space=vmem, size = 0x2000, scoped, tag = 'input window, operand 4, single buffered']
    #allocation16 [shape = 'u8[8192]{0}', space=vmem, size = 0x2000, scoped, tag = 'input window, operand 5, single buffered']
    #allocation17 [shape = 's32[1]{0}', space=sflag, size = 0x4, scoped, tag = 'scoped memory for tpu_custom_call.1']
    #allocation18 [shape = 'u8[8192]{0}', space=vmem, size = 0x2000, scoped, tag = 'input window, operand 6, single buffered']
    #allocation19 [shape = 'u8[8192]{0}', space=vmem, size = 0x2000, scoped, tag = 'input window, operand 7, single buffered']
    #allocation20 [shape = 's32[1]{0}', space=sflag, size = 0x4, scoped, tag = 'scoped memory for tpu_custom_call.1']
    #allocation21 [shape = 'u8[8192]{0}', space=vmem, size = 0x2000, scoped, tag = 'input window, operand 8, single buffered']
    #allocation22 [shape = 'u8[8192]{0}', space=vmem, size = 0x2000, scoped, tag = 'output window, operand 0']
    %15 = vsyncpa [#allocation8], 0
    %s16 = scalar_lea.sflag [#allocation8], 1
    %17 = vsyncpa %s16, 0
    %18 = vsyncpa [#allocation11], 0
    %s19 = scalar_lea.sflag [#allocation11], 1
    %20 = vsyncpa %s19, 0
    %21 = vsyncpa [#allocation14], 0
    %22 = vsyncpa [#allocation17], 0
    %23 = vsyncpa [#allocation20], 0
    %24 = vsyncpa [#allocation9], 0
    %s25 = scalar_lea.sflag [#allocation9], 1
    %26 = vsyncpa %s25, 0
    loop: start=0, step=1, limit=4
    $region2: #{tpu_custom_call.1} parent=1 // loop_pre_header
      _
    $region3: #{tpu_custom_call.1} parent=1 // loop_header
      %s28 = sphi 0, %s32
      %p29 = scmp.ge.s32.totalorder %s28, 4
      %s35 = sphi 0, %s47
      %s36 = sphi 0, %s43
      %s37 = sphi 0, %s35
      %s38 = sphi 0, %s36
      %s39 = sphi 0, %s37
      %s40 = sphi 0, %s38
      %s52 = sphi 0, %s54
      %s55 = sphi 0, %s52
      %s56 = sphi 0, %s55
      %s72 = sphi 0, %s56
      %s78 = sphi 0, %s80
      %s81 = sphi 0, %s78
      %s82 = sphi 0, %s81
      %s98 = sphi 0, %s82
      %s104 = sphi 0, %s106
      %s107 = sphi 0, %s104
      %s108 = sphi 0, %s107
      %s124 = sphi 0, %s108
      %s128 = sphi 0, %s128
      %s130 = sphi 0, %s128
      %s131 = sphi 0, %s130
      %s145 = sphi 0, %s131
      %s149 = sphi 0, %s149
      %s151 = sphi 0, %s149
      %s152 = sphi 0, %s151
      %s166 = sphi 0, %s152
      %s170 = sphi 0, %s170
      %s172 = sphi 0, %s170
      %s173 = sphi 0, %s172
      %s187 = sphi 0, %s173
      %s191 = sphi 0, %s191
      %s193 = sphi 0, %s191
      %s194 = sphi 0, %s193
      %s208 = sphi 0, %s194
      %s212 = sphi 0, %s212
      %s214 = sphi 0, %s212
      %s215 = sphi 0, %s214
      %s229 = sphi 0, %s215
      %s233 = sphi 0, %s233
      %s235 = sphi 0, %s233
      %s236 = sphi 0, %s235
      %s250 = sphi 0, %s236
      %s254 = sphi 0, %s254
      %s256 = sphi 0, %s254
      %s257 = sphi 0, %s256
      %s271 = sphi 0, %s257
      %s279 = sphi 0, %s281
      %s282 = sphi 0, %s279
      %s283 = sphi 0, %s282
      %s299 = sphi 0, %s283
    $region4: #{tpu_custom_call.1} parent=1 // loop_header_branch
      %31 = sbr.rel (%p29) target = $region8
    $region5: #{tpu_custom_call.1} parent=1 // loop_body
      %s33 = ssub.s32 %s28, 1
      %s34 = ssub.s32 %s28, 2
      %s41 = sadd.s32 1, %s36
      %p42 = scmp.ge.s32.totalorder %s41, 1
      %s43 = scalar_select %p42, 0, %s41
      %s44 = sadd.s32 1, %s35
      %s45 = scalar_select %p42, %s44, %s35
      %p46 = scmp.ge.s32.totalorder %s45, 2
      %s47 = scalar_select %p46, 0, %s45
      %s48 = ssub.s32 %s35, %s47
      %s49 = ssub.s32 %s36, %s43
      %s50 = sor.u32 %s48, %s49
      %p51 = scmp.eq.s32.totalorder %s50, 0
      %s53 = sadd.s32 %s52, 1
      %s54 = scalar_select %p51, %s52, %s53
      %p57 = pneg %p51
      %p58 = scmp.eq.s32.totalorder %s28, 1
      %p59 = por %p57, %p58
      %p60 = scmp.ne.s32.totalorder %s52, %s55
      %p61 = scmp.eq.s32.totalorder %s28, 0
      %p62 = por %p60, %p61
      %p63 = scmp.ne.s32.totalorder %s52, %s55
      %p64 = scmp.eq.s32.totalorder %s33, 1
      %p65 = por %p63, %p64
      %p66 = scmp.ne.s32.totalorder %s55, %s56
      %p67 = scmp.eq.s32.totalorder %s33, 0
      %p68 = por %p66, %p67
      %p69 = scmp.ne.s32.totalorder %s55, %s56
      %p70 = scmp.eq.s32.totalorder %s34, 1
      %p71 = por %p69, %p70
      %p73 = scmp.ne.s32.totalorder %s56, %s72
      %p74 = scmp.eq.s32.totalorder %s34, 0
      %p75 = por %p73, %p74
      %s76 = ssub.s32 %s35, %s47
      %p77 = scmp.eq.s32.totalorder %s76, 0
      %s79 = sadd.s32 %s78, 1
      %s80 = scalar_select %p77, %s78, %s79
      %p83 = pneg %p77
      %p84 = scmp.eq.s32.totalorder %s28, 1
      %p85 = por %p83, %p84
      %p86 = scmp.ne.s32.totalorder %s78, %s81
      %p87 = scmp.eq.s32.totalorder %s28, 0
      %p88 = por %p86, %p87
      %p89 = scmp.ne.s32.totalorder %s78, %s81
      %p90 = scmp.eq.s32.totalorder %s33, 1
      %p91 = por %p89, %p90
      %p92 = scmp.ne.s32.totalorder %s81, %s82
      %p93 = scmp.eq.s32.totalorder %s33, 0
      %p94 = por %p92, %p93
      %p95 = scmp.ne.s32.totalorder %s81, %s82
      %p96 = scmp.eq.s32.totalorder %s34, 1
      %p97 = por %p95, %p96
      %p99 = scmp.ne.s32.totalorder %s82, %s98
      %p100 = scmp.eq.s32.totalorder %s34, 0
      %p101 = por %p99, %p100
      %s102 = ssub.s32 %s35, %s47
      %p103 = scmp.eq.s32.totalorder %s102, 0
      %s105 = sadd.s32 %s104, 1
      %s106 = scalar_select %p103, %s104, %s105
      %p109 = pneg %p103
      %p110 = scmp.eq.s32.totalorder %s28, 1
      %p111 = por %p109, %p110
      %p112 = scmp.ne.s32.totalorder %s104, %s107
      %p113 = scmp.eq.s32.totalorder %s28, 0
      %p114 = por %p112, %p113
      %p115 = scmp.ne.s32.totalorder %s104, %s107
      %p116 = scmp.eq.s32.totalorder %s33, 1
      %p117 = por %p115, %p116
      %p118 = scmp.ne.s32.totalorder %s107, %s108
      %p119 = scmp.eq.s32.totalorder %s33, 0
      %p120 = por %p118, %p119
      %p121 = scmp.ne.s32.totalorder %s107, %s108
      %p122 = scmp.eq.s32.totalorder %s34, 1
      %p123 = por %p121, %p122
      %p125 = scmp.ne.s32.totalorder %s108, %s124
      %p126 = scmp.eq.s32.totalorder %s34, 0
      %p127 = por %p125, %p126
      %s129 = sadd.s32 %s128, 1
      %p132 = scmp.eq.s32.totalorder %s28, 1
      %p133 = scmp.ne.s32.totalorder %s128, %s130
      %p134 = scmp.eq.s32.totalorder %s28, 0
      %p135 = por %p133, %p134
      %p136 = scmp.ne.s32.totalorder %s128, %s130
      %p137 = scmp.eq.s32.totalorder %s33, 1
      %p138 = por %p136, %p137
      %p139 = scmp.ne.s32.totalorder %s130, %s131
      %p140 = scmp.eq.s32.totalorder %s33, 0
      %p141 = por %p139, %p140
      %p142 = scmp.ne.s32.totalorder %s130, %s131
      %p143 = scmp.eq.s32.totalorder %s34, 1
      %p144 = por %p142, %p143
      %p146 = scmp.ne.s32.totalorder %s131, %s145
      %p147 = scmp.eq.s32.totalorder %s34, 0
      %p148 = por %p146, %p147
      %s150 = sadd.s32 %s149, 1
      %p153 = scmp.eq.s32.totalorder %s28, 1
      %p154 = scmp.ne.s32.totalorder %s149, %s151
      %p155 = scmp.eq.s32.totalorder %s28, 0
      %p156 = por %p154, %p155
      %p157 = scmp.ne.s32.totalorder %s149, %s151
      %p158 = scmp.eq.s32.totalorder %s33, 1
      %p159 = por %p157, %p158
      %p160 = scmp.ne.s32.totalorder %s151, %s152
      %p161 = scmp.eq.s32.totalorder %s33, 0
      %p162 = por %p160, %p161
      %p163 = scmp.ne.s32.totalorder %s151, %s152
      %p164 = scmp.eq.s32.totalorder %s34, 1
      %p165 = por %p163, %p164
      %p167 = scmp.ne.s32.totalorder %s152, %s166
      %p168 = scmp.eq.s32.totalorder %s34, 0
      %p169 = por %p167, %p168
      %s171 = sadd.s32 %s170, 1
      %p174 = scmp.eq.s32.totalorder %s28, 1
      %p175 = scmp.ne.s32.totalorder %s170, %s172
      %p176 = scmp.eq.s32.totalorder %s28, 0
      %p177 = por %p175, %p176
      %p178 = scmp.ne.s32.totalorder %s170, %s172
      %p179 = scmp.eq.s32.totalorder %s33, 1
      %p180 = por %p178, %p179
      %p181 = scmp.ne.s32.totalorder %s172, %s173
      %p182 = scmp.eq.s32.totalorder %s33, 0
      %p183 = por %p181, %p182
      %p184 = scmp.ne.s32.totalorder %s172, %s173
      %p185 = scmp.eq.s32.totalorder %s34, 1
      %p186 = por %p184, %p185
      %p188 = scmp.ne.s32.totalorder %s173, %s187
      %p189 = scmp.eq.s32.totalorder %s34, 0
      %p190 = por %p188, %p189
      %s192 = sadd.s32 %s191, 1
      %p195 = scmp.eq.s32.totalorder %s28, 1
      %p196 = scmp.ne.s32.totalorder %s191, %s193
      %p197 = scmp.eq.s32.totalorder %s28, 0
      %p198 = por %p196, %p197
      %p199 = scmp.ne.s32.totalorder %s191, %s193
      %p200 = scmp.eq.s32.totalorder %s33, 1
      %p201 = por %p199, %p200
      %p202 = scmp.ne.s32.totalorder %s193, %s194
      %p203 = scmp.eq.s32.totalorder %s33, 0
      %p204 = por %p202, %p203
      %p205 = scmp.ne.s32.totalorder %s193, %s194
      %p206 = scmp.eq.s32.totalorder %s34, 1
      %p207 = por %p205, %p206
      %p209 = scmp.ne.s32.totalorder %s194, %s208
      %p210 = scmp.eq.s32.totalorder %s34, 0
      %p211 = por %p209, %p210
      %s213 = sadd.s32 %s212, 1
      %p216 = scmp.eq.s32.totalorder %s28, 1
      %p217 = scmp.ne.s32.totalorder %s212, %s214
      %p218 = scmp.eq.s32.totalorder %s28, 0
      %p219 = por %p217, %p218
      %p220 = scmp.ne.s32.totalorder %s212, %s214
      %p221 = scmp.eq.s32.totalorder %s33, 1
      %p222 = por %p220, %p221
      %p223 = scmp.ne.s32.totalorder %s214, %s215
      %p224 = scmp.eq.s32.totalorder %s33, 0
      %p225 = por %p223, %p224
      %p226 = scmp.ne.s32.totalorder %s214, %s215
      %p227 = scmp.eq.s32.totalorder %s34, 1
      %p228 = por %p226, %p227
      %p230 = scmp.ne.s32.totalorder %s215, %s229
      %p231 = scmp.eq.s32.totalorder %s34, 0
      %p232 = por %p230, %p231
      %s234 = sadd.s32 %s233, 1
      %p237 = scmp.eq.s32.totalorder %s28, 1
      %p238 = scmp.ne.s32.totalorder %s233, %s235
      %p239 = scmp.eq.s32.totalorder %s28, 0
      %p240 = por %p238, %p239
      %p241 = scmp.ne.s32.totalorder %s233, %s235
      %p242 = scmp.eq.s32.totalorder %s33, 1
      %p243 = por %p241, %p242
      %p244 = scmp.ne.s32.totalorder %s235, %s236
      %p245 = scmp.eq.s32.totalorder %s33, 0
      %p246 = por %p244, %p245
      %p247 = scmp.ne.s32.totalorder %s235, %s236
      %p248 = scmp.eq.s32.totalorder %s34, 1
      %p249 = por %p247, %p248
      %p251 = scmp.ne.s32.totalorder %s236, %s250
      %p252 = scmp.eq.s32.totalorder %s34, 0
      %p253 = por %p251, %p252
      %s255 = sadd.s32 %s254, 1
      %p258 = scmp.eq.s32.totalorder %s28, 1
      %p259 = scmp.ne.s32.totalorder %s254, %s256
      %p260 = scmp.eq.s32.totalorder %s28, 0
      %p261 = por %p259, %p260
      %p262 = scmp.ne.s32.totalorder %s254, %s256
      %p263 = scmp.eq.s32.totalorder %s33, 1
      %p264 = por %p262, %p263
      %p265 = scmp.ne.s32.totalorder %s256, %s257
      %p266 = scmp.eq.s32.totalorder %s33, 0
      %p267 = por %p265, %p266
      %p268 = scmp.ne.s32.totalorder %s256, %s257
      %p269 = scmp.eq.s32.totalorder %s34, 1
      %p270 = por %p268, %p269
      %p272 = scmp.ne.s32.totalorder %s257, %s271
      %p273 = scmp.eq.s32.totalorder %s34, 0
      %p274 = por %p272, %p273
      %s275 = ssub.s32 %s35, %s47
      %s276 = ssub.s32 %s36, %s43
      %s277 = sor.u32 %s275, %s276
      %p278 = scmp.eq.s32.totalorder %s277, 0
      %s280 = sadd.s32 %s279, 1
      %s281 = scalar_select %p278, %s279, %s280
      %p284 = pneg %p278
      %p285 = scmp.eq.s32.totalorder %s28, 1
      %p286 = por %p284, %p285
      %p287 = scmp.ne.s32.totalorder %s279, %s282
      %p288 = scmp.eq.s32.totalorder %s28, 0
      %p289 = por %p287, %p288
      %p290 = scmp.ne.s32.totalorder %s279, %s282
      %p291 = scmp.eq.s32.totalorder %s33, 1
      %p292 = por %p290, %p291
      %p293 = scmp.ne.s32.totalorder %s282, %s283
      %p294 = scmp.eq.s32.totalorder %s33, 0
      %p295 = por %p293, %p294
      %p296 = scmp.ne.s32.totalorder %s282, %s283
      %p297 = scmp.eq.s32.totalorder %s34, 1
      %p298 = por %p296, %p297
      %p300 = scmp.ne.s32.totalorder %s283, %s299
      %p301 = scmp.eq.s32.totalorder %s34, 0
      %p302 = por %p300, %p301
      %p303 = scmp.le.s32.totalorder 1, %s28
      %p304 = scmp.lt.s32.totalorder %s28, 3
      %p305 = pnand %p303, %p304
      %p306 = pneg %p305
      // Predicated region
      $region9: #{tpu_custom_call.1} parent=5 // pred_check
        _
      $region10: #{tpu_custom_call.1} parent=5 // pred_check_branch
        %308 = sbr.rel (%p305) target = $region12
      $region11: #{tpu_custom_call.1} parent=5 // pred_region
        %s309 = ssub.s32 %s28, 1
        // Predicated region
        $region13: #{tpu_custom_call.1} parent=11 // pred_check
          %p310 = pneg %p141
        $region14: #{tpu_custom_call.1} parent=11 // pred_check_branch
          %312 = sbr.rel (%p310) target = $region16
        $region15: #{tpu_custom_call.1} parent=11 // pred_region
          %s314 = ssub.s32 256, 256
          %315 = vsyncadd [#allocation14], %s314
          %s316 = sshll.u32 [#allocation13], 4
          %s317 = int_to_ptr.vmem [resolvable:$true] %s316
          %322 = dma.hbm_to_vmem [thread:$0]  %s3, 256, %s317, [#allocation14], 64, 64, 4
        $region16: #{tpu_custom_call.1} parent=11 // pred_fallthru
          _
        // Predicated region
        $region17: #{tpu_custom_call.1} parent=11 // pred_check
          %p323 = pneg %p162
        $region18: #{tpu_custom_call.1} parent=11 // pred_check_branch
          %325 = sbr.rel (%p323) target = $region20
        $region19: #{tpu_custom_call.1} parent=11 // pred_region
          %s327 = ssub.s32 256, 256
          %328 = vsyncadd [#allocation14], %s327
          %s329 = sshll.u32 [#allocation15], 4
          %s330 = int_to_ptr.vmem [resolvable:$true] %s329
          %335 = dma.hbm_to_vmem [thread:$0]  %s4, 256, %s330, [#allocation14], 64, 64, 4
        $region20: #{tpu_custom_call.1} parent=11 // pred_fallthru
          _
        // Predicated region
        $region21: #{tpu_custom_call.1} parent=11 // pred_check
          %p336 = pneg %p183
        $region22: #{tpu_custom_call.1} parent=11 // pred_check_branch
          %338 = sbr.rel (%p336) target = $region24
        $region23: #{tpu_custom_call.1} parent=11 // pred_region
          %s340 = ssub.s32 256, 256
          %341 = vsyncadd [#allocation17], %s340
          %s342 = sshll.u32 [#allocation16], 4
          %s343 = int_to_ptr.vmem [resolvable:$true] %s342
          %348 = dma.hbm_to_vmem [thread:$0]  %s5, 256, %s343, [#allocation17], 64, 64, 4
        $region24: #{tpu_custom_call.1} parent=11 // pred_fallthru
          _
        // Predicated region
        $region25: #{tpu_custom_call.1} parent=11 // pred_check
          %p349 = pneg %p204
        $region26: #{tpu_custom_call.1} parent=11 // pred_check_branch
          %351 = sbr.rel (%p349) target = $region28
        $region27: #{tpu_custom_call.1} parent=11 // pred_region
          %s353 = ssub.s32 256, 256
          %354 = vsyncadd [#allocation17], %s353
          %s355 = sshll.u32 [#allocation18], 4
          %s356 = int_to_ptr.vmem [resolvable:$true] %s355
          %361 = dma.hbm_to_vmem [thread:$0]  %s6, 256, %s356, [#allocation17], 64, 64, 4
        $region28: #{tpu_custom_call.1} parent=11 // pred_fallthru
          _
        // Predicated region
        $region29: #{tpu_custom_call.1} parent=11 // pred_check
          %p362 = pneg %p225
        $region30: #{tpu_custom_call.1} parent=11 // pred_check_branch
          %364 = sbr.rel (%p362) target = $region32
        $region31: #{tpu_custom_call.1} parent=11 // pred_region
          %s366 = ssub.s32 256, 256
          %367 = vsyncadd [#allocation20], %s366
          %s368 = sshll.u32 [#allocation19], 4
          %s369 = int_to_ptr.vmem [resolvable:$true] %s368
          %374 = dma.hbm_to_vmem [thread:$0]  %s7, 256, %s369, [#allocation20], 64, 64, 4
        $region32: #{tpu_custom_call.1} parent=11 // pred_fallthru
          _
        // Predicated region
        $region33: #{tpu_custom_call.1} parent=11 // pred_check
          %p375 = pneg %p246
        $region34: #{tpu_custom_call.1} parent=11 // pred_check_branch
          %377 = sbr.rel (%p375) target = $region36
        $region35: #{tpu_custom_call.1} parent=11 // pred_region
          %s379 = ssub.s32 256, 256
          %380 = vsyncadd [#allocation20], %s379
          %s381 = sshll.u32 [#allocation21], 4
          %s382 = int_to_ptr.vmem [resolvable:$true] %s381
          %387 = dma.hbm_to_vmem [thread:$0]  %s8, 256, %s382, [#allocation20], 64, 64, 4
        $region36: #{tpu_custom_call.1} parent=11 // pred_fallthru
          _
        // Predicated region
        $region37: #{tpu_custom_call.1} parent=11 // pred_check
          %p388 = pneg %p267
        $region38: #{tpu_custom_call.1} parent=11 // pred_check_branch
          %390 = sbr.rel (%p388) target = $region40
        $region39: #{tpu_custom_call.1} parent=11 // pred_region
          _
        $region40: #{tpu_custom_call.1} parent=11 // pred_fallthru
          _
      $region12: #{tpu_custom_call.1} parent=5 // pred_fallthru
        _
      %p391 = scmp.lt.s32.totalorder %s28, 2
      // Predicated region
      $region41: #{tpu_custom_call.1} parent=5 // pred_check
        %p392 = pneg %p391
      $region42: #{tpu_custom_call.1} parent=5 // pred_check_branch
        %394 = sbr.rel (%p392) target = $region44
      $region43: #{tpu_custom_call.1} parent=5 // pred_region
        // Predicated region
        $region45: #{tpu_custom_call.1} parent=43 // pred_check
          %p395 = pneg %p62
        $region46: #{tpu_custom_call.1} parent=43 // pred_check_branch
          %397 = sbr.rel (%p395) target = $region48
        $region47: #{tpu_custom_call.1} parent=43 // pred_region
          %s398 = sand.u32 %s52, 1
          %s399 = scalar_lea.sflag [#allocation8], %s398
          %s400 = sand.u32 %s52, 1
          %s401 = smul.addr %s400, 8
          %s402 = scalar_lea.vmem [#allocation7], %s401
          %s404 = ssub.s32 128, 128
          %405 = vsyncadd %s399, %s404
          %s406 = sadd.s32 %s36, %s35
          %s407 = smul.addr %s406, 128
          %s408 = scalar_lea.hbm %s0, %s407
          %s410 = sshll.u32 %s402, 4
          %s411 = int_to_ptr.vmem [resolvable:$true] %s410
          %413 = dma.hbm_to_vmem [thread:$0]  %s408, 128, %s411, %s399
        $region48: #{tpu_custom_call.1} parent=43 // pred_fallthru
          _
        // Predicated region
        $region49: #{tpu_custom_call.1} parent=43 // pred_check
          %p414 = pneg %p88
        $region50: #{tpu_custom_call.1} parent=43 // pred_check_branch
          %416 = sbr.rel (%p414) target = $region52
        $region51: #{tpu_custom_call.1} parent=43 // pred_region
          %s417 = sand.u32 %s28, 1
          %s418 = scalar_lea.sflag [#allocation11], %s417
          %s419 = sand.u32 %s78, 1
          %s420 = scalar_lea.vmem [#allocation10], %s419
          %s422 = ssub.s32 16, 16
          %423 = vsyncadd %s418, %s422
          %s424 = smul.addr %s35, 16
          %s425 = scalar_lea.hbm %s1, %s424
          %s427 = sshll.u32 %s420, 4
          %s428 = int_to_ptr.vmem [resolvable:$true] %s427
          %430 = dma.hbm_to_vmem [thread:$0]  %s425, 16, %s428, %s418
        $region52: #{tpu_custom_call.1} parent=43 // pred_fallthru
          _
        // Predicated region
        $region53: #{tpu_custom_call.1} parent=43 // pred_check
          %p431 = pneg %p114
        $region54: #{tpu_custom_call.1} parent=43 // pred_check_branch
          %433 = sbr.rel (%p431) target = $region56
        $region55: #{tpu_custom_call.1} parent=43 // pred_region
          %s434 = sand.u32 %s28, 1
          %s435 = scalar_lea.sflag [#allocation11], %s434
          %s436 = sand.u32 %s104, 1
          %s437 = smul.addr %s436, 8
          %s438 = scalar_lea.vmem [#allocation12], %s437
          %s440 = ssub.s32 128, 128
          %441 = vsyncadd %s435, %s440
          %s442 = smul.addr %s35, 128
          %s443 = scalar_lea.hbm %s2, %s442
          %s445 = sshll.u32 %s438, 4
          %s446 = int_to_ptr.vmem [resolvable:$true] %s445
          %448 = dma.hbm_to_vmem [thread:$0]  %s443, 128, %s446, %s435
        $region56: #{tpu_custom_call.1} parent=43 // pred_fallthru
          _
      $region44: #{tpu_custom_call.1} parent=5 // pred_fallthru
        _
      %p449 = scmp.le.s32.totalorder 1, %s28
      %p450 = scmp.lt.s32.totalorder %s28, 3
      %p451 = pnand %p449, %p450
      %p452 = pneg %p451
      // Predicated region
      $region57: #{tpu_custom_call.1} parent=5 // pred_check
        _
      $region58: #{tpu_custom_call.1} parent=5 // pred_check_branch
        %454 = sbr.rel (%p451) target = $region60
      $region59: #{tpu_custom_call.1} parent=5 // pred_region
        %s455 = ssub.s32 %s28, 1
        %s456 = sand.u32 %s55, 1
        %s457 = scalar_lea.sflag [#allocation8], %s456
        %s458 = sand.u32 %s55, 1
        %s459 = smul.addr %s458, 8
        %s460 = scalar_lea.vmem [#allocation7], %s459
        // Predicated region
        $region61: #{tpu_custom_call.1} parent=59 // pred_check
          %p461 = pneg %p68
        $region62: #{tpu_custom_call.1} parent=59 // pred_check_branch
          %463 = sbr.rel (%p461) target = $region64
        $region63: #{tpu_custom_call.1} parent=59 // pred_region
          %464 = dma.done %s457, 128
        $region64: #{tpu_custom_call.1} parent=59 // pred_fallthru
          _
        %s465 = sand.u32 %s33, 1
        %s466 = scalar_lea.sflag [#allocation11], %s465
        %s467 = sand.u32 %s81, 1
        %s468 = scalar_lea.vmem [#allocation10], %s467
        // Predicated region
        $region65: #{tpu_custom_call.1} parent=59 // pred_check
          %p469 = pneg %p94
        $region66: #{tpu_custom_call.1} parent=59 // pred_check_branch
          %471 = sbr.rel (%p469) target = $region68
        $region67: #{tpu_custom_call.1} parent=59 // pred_region
          %472 = dma.done %s466, 16
        $region68: #{tpu_custom_call.1} parent=59 // pred_fallthru
          _
        %s473 = sand.u32 %s33, 1
        %s474 = scalar_lea.sflag [#allocation11], %s473
        %s475 = sand.u32 %s107, 1
        %s476 = smul.addr %s475, 8
        %s477 = scalar_lea.vmem [#allocation12], %s476
        // Predicated region
        $region69: #{tpu_custom_call.1} parent=59 // pred_check
          %p478 = pneg %p120
        $region70: #{tpu_custom_call.1} parent=59 // pred_check_branch
          %480 = sbr.rel (%p478) target = $region72
        $region71: #{tpu_custom_call.1} parent=59 // pred_region
          %481 = dma.done %s474, 128
        $region72: #{tpu_custom_call.1} parent=59 // pred_fallthru
          _
        // Predicated region
        $region73: #{tpu_custom_call.1} parent=59 // pred_check
          %p482 = pneg %p141
        $region74: #{tpu_custom_call.1} parent=59 // pred_check_branch
          %484 = sbr.rel (%p482) target = $region76
        $region75: #{tpu_custom_call.1} parent=59 // pred_region
          %485 = dma.done [#allocation14], 256
        $region76: #{tpu_custom_call.1} parent=59 // pred_fallthru
          _
        // Predicated region
        $region77: #{tpu_custom_call.1} parent=59 // pred_check
          %p486 = pneg %p162
        $region78: #{tpu_custom_call.1} parent=59 // pred_check_branch
          %488 = sbr.rel (%p486) target = $region80
        $region79: #{tpu_custom_call.1} parent=59 // pred_region
          %489 = dma.done [#allocation14], 256
        $region80: #{tpu_custom_call.1} parent=59 // pred_fallthru
          _
        // Predicated region
        $region81: #{tpu_custom_call.1} parent=59 // pred_check
          %p490 = pneg %p183
        $region82: #{tpu_custom_call.1} parent=59 // pred_check_branch
          %492 = sbr.rel (%p490) target = $region84
        $region83: #{tpu_custom_call.1} parent=59 // pred_region
          %493 = dma.done [#allocation17], 256
        $region84: #{tpu_custom_call.1} parent=59 // pred_fallthru
          _
        // Predicated region
        $region85: #{tpu_custom_call.1} parent=59 // pred_check
          %p494 = pneg %p204
        $region86: #{tpu_custom_call.1} parent=59 // pred_check_branch
          %496 = sbr.rel (%p494) target = $region88
        $region87: #{tpu_custom_call.1} parent=59 // pred_region
          %497 = dma.done [#allocation17], 256
        $region88: #{tpu_custom_call.1} parent=59 // pred_fallthru
          _
        // Predicated region
        $region89: #{tpu_custom_call.1} parent=59 // pred_check
          %p498 = pneg %p225
        $region90: #{tpu_custom_call.1} parent=59 // pred_check_branch
          %500 = sbr.rel (%p498) target = $region92
        $region91: #{tpu_custom_call.1} parent=59 // pred_region
          %501 = dma.done [#allocation20], 256
        $region92: #{tpu_custom_call.1} parent=59 // pred_fallthru
          _
        // Predicated region
        $region93: #{tpu_custom_call.1} parent=59 // pred_check
          %p502 = pneg %p246
        $region94: #{tpu_custom_call.1} parent=59 // pred_check_branch
          %504 = sbr.rel (%p502) target = $region96
        $region95: #{tpu_custom_call.1} parent=59 // pred_region
          %505 = dma.done [#allocation20], 256
        $region96: #{tpu_custom_call.1} parent=59 // pred_fallthru
          _
        %s506 = sand.u32 %s55, 1
        %s507 = scalar_lea.sflag [#allocation8], %s506
        %s508 = sand.u32 %s55, 1
        %s509 = smul.addr %s508, 8
        %s510 = scalar_lea.vmem [#allocation7], %s509
        %p511 = pneg %p68
        %p512 = pneg %p65
        %s513 = sand.u32 %s33, 1
        %s514 = scalar_lea.sflag [#allocation11], %s513
        %s515 = sand.u32 %s81, 1
        %s516 = scalar_lea.vmem [#allocation10], %s515
        %p517 = pneg %p94
        %p518 = pneg %p91
        %s519 = sand.u32 %s33, 1
        %s520 = scalar_lea.sflag [#allocation11], %s519
        %s521 = sand.u32 %s107, 1
        %s522 = smul.addr %s521, 8
        %s523 = scalar_lea.vmem [#allocation12], %s522
        %p524 = pneg %p120
        %p525 = pneg %p117
        %p526 = pneg %p141
        %p527 = pneg %p138
        %p528 = pneg %p162
        %p529 = pneg %p159
        %p530 = pneg %p183
        %p531 = pneg %p180
        %p532 = pneg %p204
        %p533 = pneg %p201
        %p534 = pneg %p225
        %p535 = pneg %p222
        %p536 = pneg %p246
        %p537 = pneg %p243
        %p538 = pneg %p267
        %p539 = pneg %p264
        %p540 = pneg %p295
        %p541 = pneg %p292
        %s542 = sand.u32 %s282, 1
        %s543 = scalar_lea.sflag [#allocation9], %s542
        %s544 = sand.u32 %s282, 1
        %s545 = smul.addr %s544, 8
        %s546 = scalar_lea.vmem [#allocation22], %s545
        %p548 = scmp.eq.s32.totalorder %s38, 0
        // Predicated region
        $region97: #{tpu_custom_call.1} parent=59 // pred_check
          %p549 = pneg %p548
        $region98: #{tpu_custom_call.1} parent=59 // pred_check_branch
          %551 = sbr.rel (%p549) target = $region100
        $region99: #{tpu_custom_call.1} parent=59 // pred_region
          %v552 = vld [vmem:[%s477] sm:$0xff]
          %v553 = vpack.c.bf16 %v552, %v552
          %v554 = vld [vmem:[%s468] sm:$0x1]
          %v555 = vpack.c.bf16 %v554, %v554
          %v556 = vld [vmem:[#allocation15] sm:$0xf]
          %v557 = vld [vmem:[#allocation15 + $0x4] sm:$0xf]
          %v558 = vld [vmem:[#allocation15 + $0x8] sm:$0xf]
          %v559 = vld [vmem:[#allocation15 + $0xc] sm:$0xf]
          %v564 = vunpack.c.l.b16 %v556
          %v565 = vunpack.c.l.b16 %v557
          %v566 = vunpack.c.l.b16 %v558
          %v567 = vunpack.c.l.b16 %v559
          %v568 = vpack.c.b16 %v565, %v564
          %v569 = vpack.c.b16 %v567, %v566
          %vm572 = vcmask 261120
          %v574 = vsel %vm572, %v553, 0
          %576 = vmatprep.subr.bf16.mxu0 0
          %577 = vmatpush1.bf16.msra.mxu0 0
          %578 = vmatprep.subr.bf16.mxu0 0
          %579 = vmatpush1.bf16.msra.mxu0 0
          %580 = vmatprep.subr.bf16.mxu0 0
          %581 = vmatpush1.bf16.msra.mxu0 0
          %582 = vmatprep.subr.bf16.mxu0 0
          %583 = vmatpush1.bf16.msra.mxu0 0
          %584 = vmatprep.subr.bf16.mxu0 0
          %585 = vmatpush1.bf16.msra.mxu0 0
          %586 = vmatprep.subr.bf16.mxu0 0
          %587 = vmatpush1.bf16.msra.mxu0 0
          %588 = vmatprep.subr.bf16.mxu0 0
          %589 = vmatpush1.bf16.msra.mxu0 %v569
          %590 = vmatprep.subr.bf16.mxu0 0
          %591 = vmatpush1.bf16.msra.mxu0 %v568
          %592 = vmatprep.subr.bf16.mxu0 0
          %593 = vmatpush2.bf16.msra.mxu0 0
          %594 = vmatprep.subr.bf16.mxu0 0
          %595 = vmatpush2.bf16.msra.mxu0 0
          %596 = vmatprep.subr.bf16.mxu0 0
          %597 = vmatpush2.bf16.msra.mxu0 0
          %598 = vmatprep.subr.bf16.mxu0 0
          %599 = vmatpush2.bf16.msra.mxu0 0
          %600 = vmatprep.subr.bf16.mxu0 0
          %601 = vmatpush2.bf16.msra.mxu0 0
          %602 = vmatprep.subr.bf16.mxu0 0
          %603 = vmatpush2.bf16.msra.mxu0 0
          %604 = vmatprep.subr.bf16.mxu0 0
          %605 = vmatpush2.bf16.msra.mxu0 0
          %606 = vmatprep.subr.bf16.mxu0 0
          %607 = vmatpush2.bf16.msra.mxu0 0
          %608 = vmatprep.mubr.bf16.mxu0 0
          %609 = vmatmul.mubr.bf16.gmra.mxu0 %v574
          %v610 = vpop.f32.mrf.mxu0
          %v611 = vadd.f32 0.0, %v610
          %v612 = vpop.f32.mrf.mxu0
          %v613 = vpop.f32.mrf.mxu0
          %v614 = vpop.f32.mrf.mxu0
          %615 = vdwg.mxu0
          %v616 = vpack.c.bf16 %v611, %v611
          %vm617 = vcmask 257024
          %618 = vst.msk [vmem:[#allocation2] sm:$0xf] %vm617, %v616
          %v619 = vld [vmem:[#allocation16] sm:$0xf]
          %v620 = vld [vmem:[#allocation16 + $0x4] sm:$0xf]
          %v621 = vld [vmem:[#allocation16 + $0x8] sm:$0xf]
          %v622 = vld [vmem:[#allocation16 + $0xc] sm:$0xf]
          %v627 = vunpack.c.l.b16 %v619
          %v628 = vunpack.c.l.b16 %v620
          %v629 = vunpack.c.l.b16 %v621
          %v630 = vunpack.c.l.b16 %v622
          %v631 = vpack.c.b16 %v628, %v627
          %v632 = vpack.c.b16 %v630, %v629
          %635 = vmatprep.subr.bf16.mxu0 0
          %636 = vmatpush1.bf16.msra.mxu0 0
          %637 = vmatprep.subr.bf16.mxu0 0
          %638 = vmatpush1.bf16.msra.mxu0 0
          %639 = vmatprep.subr.bf16.mxu0 0
          %640 = vmatpush1.bf16.msra.mxu0 0
          %641 = vmatprep.subr.bf16.mxu0 0
          %642 = vmatpush1.bf16.msra.mxu0 0
          %643 = vmatprep.subr.bf16.mxu0 0
          %644 = vmatpush1.bf16.msra.mxu0 0
          %645 = vmatprep.subr.bf16.mxu0 0
          %646 = vmatpush1.bf16.msra.mxu0 0
          %647 = vmatprep.subr.bf16.mxu0 0
          %648 = vmatpush1.bf16.msra.mxu0 %v632
          %649 = vmatprep.subr.bf16.mxu0 0
          %650 = vmatpush1.bf16.msra.mxu0 %v631
          %651 = vmatprep.subr.bf16.mxu0 0
          %652 = vmatpush2.bf16.msra.mxu0 0
          %653 = vmatprep.subr.bf16.mxu0 0
          %654 = vmatpush2.bf16.msra.mxu0 0
          %655 = vmatprep.subr.bf16.mxu0 0
          %656 = vmatpush2.bf16.msra.mxu0 0
          %657 = vmatprep.subr.bf16.mxu0 0
          %658 = vmatpush2.bf16.msra.mxu0 0
          %659 = vmatprep.subr.bf16.mxu0 0
          %660 = vmatpush2.bf16.msra.mxu0 0
          %661 = vmatprep.subr.bf16.mxu0 0
          %662 = vmatpush2.bf16.msra.mxu0 0
          %663 = vmatprep.subr.bf16.mxu0 0
          %664 = vmatpush2.bf16.msra.mxu0 0
          %665 = vmatprep.subr.bf16.mxu0 0
          %666 = vmatpush2.bf16.msra.mxu0 0
          %667 = vmatprep.mubr.bf16.mxu0 0
          %668 = vmatmul.mubr.bf16.gmra.mxu0 %v574
          %v669 = vpop.f32.mrf.mxu0
          %v670 = vadd.f32 0.0, %v669
          %v671 = vpop.f32.mrf.mxu0
          %v672 = vpop.f32.mrf.mxu0
          %v673 = vpop.f32.mrf.mxu0
          %674 = vdwg.mxu0
          %v675 = vpack.c.bf16 %v670, %v670
          %676 = vst.msk [vmem:[#allocation3] sm:$0xf] %vm617, %v675
          %v677 = vld [vmem:[#allocation18] sm:$0xf]
          %v678 = vld [vmem:[#allocation18 + $0x4] sm:$0xf]
          %v679 = vld [vmem:[#allocation18 + $0x8] sm:$0xf]
          %v680 = vld [vmem:[#allocation18 + $0xc] sm:$0xf]
          %v685 = vunpack.c.l.b16 %v677
          %v686 = vunpack.c.l.b16 %v678
          %v687 = vunpack.c.l.b16 %v679
          %v688 = vunpack.c.l.b16 %v680
          %v689 = vpack.c.b16 %v686, %v685
          %v690 = vpack.c.b16 %v688, %v687
          %v694 = vsel %vm572, %v555, 0
          %696 = vmatprep.subr.bf16.mxu0 0
          %697 = vmatpush1.bf16.msra.mxu0 0
          %698 = vmatprep.subr.bf16.mxu0 0
          %699 = vmatpush1.bf16.msra.mxu0 0
          %700 = vmatprep.subr.bf16.mxu0 0
          %701 = vmatpush1.bf16.msra.mxu0 0
          %702 = vmatprep.subr.bf16.mxu0 0
          %703 = vmatpush1.bf16.msra.mxu0 0
          %704 = vmatprep.subr.bf16.mxu0 0
          %705 = vmatpush1.bf16.msra.mxu0 0
          %706 = vmatprep.subr.bf16.mxu0 0
          %707 = vmatpush1.bf16.msra.mxu0 0
          %708 = vmatprep.subr.bf16.mxu0 0
          %709 = vmatpush1.bf16.msra.mxu0 %v690
          %710 = vmatprep.subr.bf16.mxu0 0
          %711 = vmatpush1.bf16.msra.mxu0 %v689
          %712 = vmatprep.subr.bf16.mxu0 0
          %713 = vmatpush2.bf16.msra.mxu0 0
          %714 = vmatprep.subr.bf16.mxu0 0
          %715 = vmatpush2.bf16.msra.mxu0 0
          %716 = vmatprep.subr.bf16.mxu0 0
          %717 = vmatpush2.bf16.msra.mxu0 0
          %718 = vmatprep.subr.bf16.mxu0 0
          %719 = vmatpush2.bf16.msra.mxu0 0
          %720 = vmatprep.subr.bf16.mxu0 0
          %721 = vmatpush2.bf16.msra.mxu0 0
          %722 = vmatprep.subr.bf16.mxu0 0
          %723 = vmatpush2.bf16.msra.mxu0 0
          %724 = vmatprep.subr.bf16.mxu0 0
          %725 = vmatpush2.bf16.msra.mxu0 0
          %726 = vmatprep.subr.bf16.mxu0 0
          %727 = vmatpush2.bf16.msra.mxu0 0
          %728 = vmatprep.mubr.bf16.mxu0 0
          %729 = vmatmul.mubr.bf16.gmra.mxu0 %v694
          %v730 = vpop.f32.mrf.mxu0
          %v731 = vadd.f32 0.0, %v730
          %v732 = vpop.f32.mrf.mxu0
          %v733 = vpop.f32.mrf.mxu0
          %v734 = vpop.f32.mrf.mxu0
          %735 = vdwg.mxu0
          %v736 = vpack.c.bf16 %v731, %v731
          %vm737 = vcmask 253952
          %vm738 = vsmask.f32 256
          %vm739 = vmand %vm737, %vm738
          %v740 = vld [vmem:[#allocation4] sm:$0x1]
          %v741 = vsel %vm739, %v736, %v740
          %742 = vst [vmem:[#allocation4] sm:$0x1] %v741
          %v743 = vld [vmem:[#allocation19] sm:$0xf]
          %v744 = vld [vmem:[#allocation19 + $0x4] sm:$0xf]
          %v745 = vld [vmem:[#allocation19 + $0x8] sm:$0xf]
          %v746 = vld [vmem:[#allocation19 + $0xc] sm:$0xf]
          %v751 = vunpack.c.l.b16 %v743
          %v752 = vunpack.c.l.b16 %v744
          %v753 = vunpack.c.l.b16 %v745
          %v754 = vunpack.c.l.b16 %v746
          %v755 = vpack.c.b16 %v752, %v751
          %v756 = vpack.c.b16 %v754, %v753
          %759 = vmatprep.subr.bf16.mxu0 0
          %760 = vmatpush1.bf16.msra.mxu0 0
          %761 = vmatprep.subr.bf16.mxu0 0
          %762 = vmatpush1.bf16.msra.mxu0 0
          %763 = vmatprep.subr.bf16.mxu0 0
          %764 = vmatpush1.bf16.msra.mxu0 0
          %765 = vmatprep.subr.bf16.mxu0 0
          %766 = vmatpush1.bf16.msra.mxu0 0
          %767 = vmatprep.subr.bf16.mxu0 0
          %768 = vmatpush1.bf16.msra.mxu0 0
          %769 = vmatprep.subr.bf16.mxu0 0
          %770 = vmatpush1.bf16.msra.mxu0 0
          %771 = vmatprep.subr.bf16.mxu0 0
          %772 = vmatpush1.bf16.msra.mxu0 %v756
          %773 = vmatprep.subr.bf16.mxu0 0
          %774 = vmatpush1.bf16.msra.mxu0 %v755
          %775 = vmatprep.subr.bf16.mxu0 0
          %776 = vmatpush2.bf16.msra.mxu0 0
          %777 = vmatprep.subr.bf16.mxu0 0
          %778 = vmatpush2.bf16.msra.mxu0 0
          %779 = vmatprep.subr.bf16.mxu0 0
          %780 = vmatpush2.bf16.msra.mxu0 0
          %781 = vmatprep.subr.bf16.mxu0 0
          %782 = vmatpush2.bf16.msra.mxu0 0
          %783 = vmatprep.subr.bf16.mxu0 0
          %784 = vmatpush2.bf16.msra.mxu0 0
          %785 = vmatprep.subr.bf16.mxu0 0
          %786 = vmatpush2.bf16.msra.mxu0 0
          %787 = vmatprep.subr.bf16.mxu0 0
          %788 = vmatpush2.bf16.msra.mxu0 0
          %789 = vmatprep.subr.bf16.mxu0 0
          %790 = vmatpush2.bf16.msra.mxu0 0
          %791 = vmatprep.mubr.bf16.mxu0 0
          %792 = vmatmul.mubr.bf16.gmra.mxu0 %v694
          %v793 = vpop.f32.mrf.mxu0
          %v794 = vadd.f32 0.0, %v793
          %v795 = vpop.f32.mrf.mxu0
          %v796 = vpop.f32.mrf.mxu0
          %v797 = vpop.f32.mrf.mxu0
          %798 = vdwg.mxu0
          %v799 = vpack.c.bf16 %v794, %v794
          %v800 = vld [vmem:[#allocation5] sm:$0x1]
          %v801 = vsel %vm739, %v799, %v800
          %802 = vst [vmem:[#allocation5] sm:$0x1] %v801
        $region100: #{tpu_custom_call.1} parent=59 // pred_fallthru
          _
        %v803 = vld [vmem:[%s460] sm:$0xff]
        %v804 = vpack.c.bf16 %v803, %v803
        %v805 = vld [vmem:[#allocation13] sm:$0xf]
        %v806 = vld [vmem:[#allocation13 + $0x4] sm:$0xf]
        %v807 = vld [vmem:[#allocation13 + $0x8] sm:$0xf]
        %v808 = vld [vmem:[#allocation13 + $0xc] sm:$0xf]
        %v813 = vunpack.c.l.b16 %v805
        %v814 = vunpack.c.l.b16 %v806
        %v815 = vunpack.c.l.b16 %v807
        %v816 = vunpack.c.l.b16 %v808
        %v817 = vpack.c.b16 %v814, %v813
        %v818 = vpack.c.b16 %v816, %v815
        %vm821 = vcmask 261120
        %v823 = vsel %vm821, %v804, 0
        %825 = vmatprep.subr.bf16.mxu0 0
        %826 = vmatpush1.bf16.msra.mxu0 0
        %827 = vmatprep.subr.bf16.mxu0 0
        %828 = vmatpush1.bf16.msra.mxu0 0
        %829 = vmatprep.subr.bf16.mxu0 0
        %830 = vmatpush1.bf16.msra.mxu0 0
        %831 = vmatprep.subr.bf16.mxu0 0
        %832 = vmatpush1.bf16.msra.mxu0 0
        %833 = vmatprep.subr.bf16.mxu0 0
        %834 = vmatpush1.bf16.msra.mxu0 0
        %835 = vmatprep.subr.bf16.mxu0 0
        %836 = vmatpush1.bf16.msra.mxu0 0
        %837 = vmatprep.subr.bf16.mxu0 0
        %838 = vmatpush1.bf16.msra.mxu0 %v818
        %839 = vmatprep.subr.bf16.mxu0 0
        %840 = vmatpush1.bf16.msra.mxu0 %v817
        %841 = vmatprep.subr.bf16.mxu0 0
        %842 = vmatpush2.bf16.msra.mxu0 0
        %843 = vmatprep.subr.bf16.mxu0 0
        %844 = vmatpush2.bf16.msra.mxu0 0
        %845 = vmatprep.subr.bf16.mxu0 0
        %846 = vmatpush2.bf16.msra.mxu0 0
        %847 = vmatprep.subr.bf16.mxu0 0
        %848 = vmatpush2.bf16.msra.mxu0 0
        %849 = vmatprep.subr.bf16.mxu0 0
        %850 = vmatpush2.bf16.msra.mxu0 0
        %851 = vmatprep.subr.bf16.mxu0 0
        %852 = vmatpush2.bf16.msra.mxu0 0
        %853 = vmatprep.subr.bf16.mxu0 0
        %854 = vmatpush2.bf16.msra.mxu0 0
        %855 = vmatprep.subr.bf16.mxu0 0
        %856 = vmatpush2.bf16.msra.mxu0 0
        %857 = vmatprep.mubr.bf16.mxu0 0
        %858 = vmatmul.mubr.bf16.gmra.mxu0 %v823
        %v859 = vpop.f32.mrf.mxu0
        %v860 = vadd.f32 0.0, %v859
        %v861 = vpop.f32.mrf.mxu0
        %v862 = vpop.f32.mrf.mxu0
        %v863 = vpop.f32.mrf.mxu0
        %864 = vdwg.mxu0
        %v865 = vmul.f32 %v860, 0.35355338
        %v866 = vpack.c.bf16 %v865, %v865
        %v867 = vld [vmem:[#allocation2] sm:$0xf]
        %v868 = vld [vmem:[#allocation3] sm:$0xf]
        %v869 = vld [vmem:[#allocation4] sm:$0x1]
        %v870 = vunpack.c.l.bf16 %v869
        %v871 = vld [vmem:[#allocation5] sm:$0x1]
        %v872 = vunpack.c.l.bf16 %v871
        %v873 = vlaneseq
        %v874 = vshrl.u32 %v873, 7
        %v875 = vsub.s32 0, %v874
        %v876 = vrot.slane %v870, %v875
        %v877 = vmul.f32 %v865, %v876
        %vm878 = vcmask 64512
        %v880 = vsel %vm878, %v866, 0
        %v883 = vsel %vm878, %v867, 0
        %885 = vmatprep.subr.bf16.mxu0 0
        %886 = vmatpush1.bf16.xpose.msra.mxu0 0
        %887 = vmatprep.subr.bf16.mxu0 0
        %888 = vmatpush1.bf16.xpose.msra.mxu0 0
        %889 = vmatprep.subr.bf16.mxu0 0
        %890 = vmatpush1.bf16.xpose.msra.mxu0 0
        %891 = vmatprep.subr.bf16.mxu0 0
        %892 = vmatpush1.bf16.xpose.msra.mxu0 0
        %893 = vmatprep.subr.bf16.mxu0 0
        %894 = vmatpush1.bf16.xpose.msra.mxu0 0
        %895 = vmatprep.subr.bf16.mxu0 0
        %896 = vmatpush1.bf16.xpose.msra.mxu0 0
        %897 = vmatprep.subr.bf16.mxu0 0
        %898 = vmatpush1.bf16.xpose.msra.mxu0 0
        %899 = vmatprep.subr.bf16.mxu0 0
        %900 = vmatpush1.bf16.xpose.msra.mxu0 %v883
        %901 = vmatprep.subr.bf16.mxu0 0
        %902 = vmatpush2.bf16.xpose.msra.mxu0 0
        %903 = vmatprep.subr.bf16.mxu0 0
        %904 = vmatpush2.bf16.xpose.msra.mxu0 0
        %905 = vmatprep.subr.bf16.mxu0 0
        %906 = vmatpush2.bf16.xpose.msra.mxu0 0
        %907 = vmatprep.subr.bf16.mxu0 0
        %908 = vmatpush2.bf16.xpose.msra.mxu0 0
        %909 = vmatprep.subr.bf16.mxu0 0
        %910 = vmatpush2.bf16.xpose.msra.mxu0 0
        %911 = vmatprep.subr.bf16.mxu0 0
        %912 = vmatpush2.bf16.xpose.msra.mxu0 0
        %913 = vmatprep.subr.bf16.mxu0 0
        %914 = vmatpush2.bf16.xpose.msra.mxu0 0
        %915 = vmatprep.subr.bf16.mxu0 0
        %916 = vmatpush2.bf16.xpose.msra.mxu0 0
        %917 = vmatprep.mubr.bf16.mxu0 0
        %918 = vmatmul.mubr.bf16.gmra.mxu0 %v880
        %v919 = vpop.f32.mrf.mxu0
        %v920 = vadd.f32 0.0, %v919
        %v921 = vpop.f32.mrf.mxu0
        %v922 = vpop.f32.mrf.mxu0
        %v923 = vpop.f32.mrf.mxu0
        %924 = vdwg.mxu0
        %v925 = vsel %vm878, %v877, 0.0
        %926 = vadd.xlane.f32.xlu0 %v925
        %v927 = vpop.xlane.xlu0 %926
        %v928 = vsel %vm878, %v920, -inf
        %929 = vmax.xlane.f32.xlu0 %v928
        %v930 = vpop.xlane.xlu0 %929
        %v931 = vmax.f32 %v930, %v927
        %v932 = vsub.f32 %v920, %v931
        %v933 = vmul.f32 %v932, 1.442695
        %v934 = vpow.pop %v933
        %v935 = vsub.f32 %v927, %v931
        %v936 = vmul.f32 %v935, 1.442695
        %v937 = vpow.pop %v936
        %v938 = vsel %vm878, %v934, 0.0
        %939 = vadd.xlane.f32.xlu0 %v938
        %v940 = vpop.xlane.xlu0 %939
        %v941 = vadd.f32 %v940, %v937
        %v942 = vpack.c.bf16 %v934, %v934
        %v943 = vlaneseq
        %v944 = vshrl.u32 %v943, 7
        %v945 = vsub.s32 0, %v944
        %v946 = vrot.slane %v872, %v945
        %v947 = vmul.f32 %v937, %v946
        %v949 = vsel %vm878, %v942, 0
        %vm951 = vcmask 1043456
        %v953 = vsel %vm951, %v868, 0
        %955 = vmatprep.subr.bf16.mxu0 0
        %956 = vmatpush1.bf16.msra.mxu0 0
        %957 = vmatprep.subr.bf16.mxu0 0
        %958 = vmatpush1.bf16.msra.mxu0 0
        %959 = vmatprep.subr.bf16.mxu0 0
        %960 = vmatpush1.bf16.msra.mxu0 0
        %961 = vmatprep.subr.bf16.mxu0 0
        %962 = vmatpush1.bf16.msra.mxu0 0
        %963 = vmatprep.subr.bf16.mxu0 0
        %964 = vmatpush1.bf16.msra.mxu0 0
        %965 = vmatprep.subr.bf16.mxu0 0
        %966 = vmatpush1.bf16.msra.mxu0 0
        %967 = vmatprep.subr.bf16.mxu0 0
        %968 = vmatpush1.bf16.msra.mxu0 0
        %969 = vmatprep.subr.bf16.mxu0 0
        %970 = vmatpush1.bf16.msra.mxu0 %v953
        %971 = vmatprep.subr.bf16.mxu0 0
        %972 = vmatpush2.bf16.msra.mxu0 0
        %973 = vmatprep.subr.bf16.mxu0 0
        %974 = vmatpush2.bf16.msra.mxu0 0
        %975 = vmatprep.subr.bf16.mxu0 0
        %976 = vmatpush2.bf16.msra.mxu0 0
        %977 = vmatprep.subr.bf16.mxu0 0
        %978 = vmatpush2.bf16.msra.mxu0 0
        %979 = vmatprep.subr.bf16.mxu0 0
        %980 = vmatpush2.bf16.msra.mxu0 0
        %981 = vmatprep.subr.bf16.mxu0 0
        %982 = vmatpush2.bf16.msra.mxu0 0
        %983 = vmatprep.subr.bf16.mxu0 0
        %984 = vmatpush2.bf16.msra.mxu0 0
        %985 = vmatprep.subr.bf16.mxu0 0
        %986 = vmatpush2.bf16.msra.mxu0 0
        %987 = vmatprep.mubr.bf16.mxu0 0
        %988 = vmatmul.mubr.bf16.gmra.mxu0 %v949
        %v989 = vpop.f32.mrf.mxu0
        %v990 = vadd.f32 %v947, %v989
        %v991 = vpop.f32.mrf.mxu0
        %v992 = vpop.f32.mrf.mxu0
        %v993 = vpop.f32.mrf.mxu0
        %994 = vdwg.mxu0
        %v995 = vrcp.pop %v941
        %v996 = vmul.f32 %v990, %v995
        %v997 = vpack.c.bf16 %v996, %v996
        %vm998 = vcmask 60416
        %999 = vst.msk [vmem:[#allocation6] sm:$0xf] %vm998, %v997
        %1001 = vrot.lane.b32.xlu0 %v866, 120
        %v1002 = vpop.permute.xlu0 %1001
        %v1004 = vunpack.c.l.b16 %v867
        %v1005 = vpack.c.b16 %v1004, %v1004
        %1006 = vrot.lane.b32.xlu0 %v1005, 120
        %v1007 = vpop.permute.xlu0 %1006
        %v1009 = vsel %vm878, %v1002, 0
        %v1012 = vsel %vm878, %v1007, 0
        %1014 = vmatprep.subr.bf16.mxu0 0
        %1015 = vmatpush1.bf16.xpose.msra.mxu0 0
        %1016 = vmatprep.subr.bf16.mxu0 0
        %1017 = vmatpush1.bf16.xpose.msra.mxu0 0
        %1018 = vmatprep.subr.bf16.mxu0 0
        %1019 = vmatpush1.bf16.xpose.msra.mxu0 0
        %1020 = vmatprep.subr.bf16.mxu0 0
        %1021 = vmatpush1.bf16.xpose.msra.mxu0 0
        %1022 = vmatprep.subr.bf16.mxu0 0
        %1023 = vmatpush1.bf16.xpose.msra.mxu0 0
        %1024 = vmatprep.subr.bf16.mxu0 0
        %1025 = vmatpush1.bf16.xpose.msra.mxu0 0
        %1026 = vmatprep.subr.bf16.mxu0 0
        %1027 = vmatpush1.bf16.xpose.msra.mxu0 0
        %1028 = vmatprep.subr.bf16.mxu0 0
        %1029 = vmatpush1.bf16.xpose.msra.mxu0 %v1012
        %1030 = vmatprep.subr.bf16.mxu0 0
        %1031 = vmatpush2.bf16.xpose.msra.mxu0 0
        %1032 = vmatprep.subr.bf16.mxu0 0
        %1033 = vmatpush2.bf16.xpose.msra.mxu0 0
        %1034 = vmatprep.subr.bf16.mxu0 0
        %1035 = vmatpush2.bf16.xpose.msra.mxu0 0
        %1036 = vmatprep.subr.bf16.mxu0 0
        %1037 = vmatpush2.bf16.xpose.msra.mxu0 0
        %1038 = vmatprep.subr.bf16.mxu0 0
        %1039 = vmatpush2.bf16.xpose.msra.mxu0 0
        %1040 = vmatprep.subr.bf16.mxu0 0
        %1041 = vmatpush2.bf16.xpose.msra.mxu0 0
        %1042 = vmatprep.subr.bf16.mxu0 0
        %1043 = vmatpush2.bf16.xpose.msra.mxu0 0
        %1044 = vmatprep.subr.bf16.mxu0 0
        %1045 = vmatpush2.bf16.xpose.msra.mxu0 0
        %1046 = vmatprep.mubr.bf16.mxu0 0
        %1047 = vmatmul.mubr.bf16.gmra.mxu0 %v1009
        %v1048 = vpop.f32.mrf.mxu0
        %v1049 = vadd.f32 0.0, %v1048
        %v1050 = vpop.f32.mrf.mxu0
        %v1051 = vpop.f32.mrf.mxu0
        %v1052 = vpop.f32.mrf.mxu0
        %1053 = vdwg.mxu0
        %1055 = vrot.lane.b32.xlu0 %v877, 120
        %v1056 = vpop.permute.xlu0 %1055
        %v1058 = vsel %vm878, %v1056, 0.0
        %1059 = vadd.xlane.f32.xlu0 %v1058
        %v1060 = vpop.xlane.xlu0 %1059
        %v1061 = vsel %vm878, %v1049, -inf
        %1062 = vmax.xlane.f32.xlu0 %v1061
        %v1063 = vpop.xlane.xlu0 %1062
        %v1064 = vmax.f32 %v1063, %v1060
        %v1065 = vsub.f32 %v1049, %v1064
        %v1066 = vmul.f32 %v1065, 1.442695
        %v1067 = vpow.pop %v1066
        %v1068 = vsub.f32 %v1060, %v1064
        %v1069 = vmul.f32 %v1068, 1.442695
        %v1070 = vpow.pop %v1069
        %v1071 = vsel %vm878, %v1067, 0.0
        %1072 = vadd.xlane.f32.xlu0 %v1071
        %v1073 = vpop.xlane.xlu0 %1072
        %v1074 = vadd.f32 %v1073, %v1070
        %v1075 = vpack.c.bf16 %v1067, %v1067
        %v1076 = vmul.f32 %v1070, %v946
        %v1078 = vunpack.c.l.b16 %v868
        %v1079 = vpack.c.b16 %v1078, %v1078
        %1080 = vrot.lane.b32.xlu0 %v1079, 120
        %v1081 = vpop.permute.xlu0 %1080
        %1083 = vrot.lane.b32.xlu0 %v1076, 120
        %v1084 = vpop.permute.xlu0 %1083
        %v1087 = vsel %vm878, %v1075, 0
        %v1090 = vsel %vm951, %v1081, 0
        %1092 = vmatprep.subr.bf16.mxu0 0
        %1093 = vmatpush1.bf16.msra.mxu0 0
        %1094 = vmatprep.subr.bf16.mxu0 0
        %1095 = vmatpush1.bf16.msra.mxu0 0
        %1096 = vmatprep.subr.bf16.mxu0 0
        %1097 = vmatpush1.bf16.msra.mxu0 0
        %1098 = vmatprep.subr.bf16.mxu0 0
        %1099 = vmatpush1.bf16.msra.mxu0 0
        %1100 = vmatprep.subr.bf16.mxu0 0
        %1101 = vmatpush1.bf16.msra.mxu0 0
        %1102 = vmatprep.subr.bf16.mxu0 0
        %1103 = vmatpush1.bf16.msra.mxu0 0
        %1104 = vmatprep.subr.bf16.mxu0 0
        %1105 = vmatpush1.bf16.msra.mxu0 0
        %1106 = vmatprep.subr.bf16.mxu0 0
        %1107 = vmatpush1.bf16.msra.mxu0 %v1090
        %1108 = vmatprep.subr.bf16.mxu0 0
        %1109 = vmatpush2.bf16.msra.mxu0 0
        %1110 = vmatprep.subr.bf16.mxu0 0
        %1111 = vmatpush2.bf16.msra.mxu0 0
        %1112 = vmatprep.subr.bf16.mxu0 0
        %1113 = vmatpush2.bf16.msra.mxu0 0
        %1114 = vmatprep.subr.bf16.mxu0 0
        %1115 = vmatpush2.bf16.msra.mxu0 0
        %1116 = vmatprep.subr.bf16.mxu0 0
        %1117 = vmatpush2.bf16.msra.mxu0 0
        %1118 = vmatprep.subr.bf16.mxu0 0
        %1119 = vmatpush2.bf16.msra.mxu0 0
        %1120 = vmatprep.subr.bf16.mxu0 0
        %1121 = vmatpush2.bf16.msra.mxu0 0
        %1122 = vmatprep.subr.bf16.mxu0 0
        %1123 = vmatpush2.bf16.msra.mxu0 0
        %1124 = vmatprep.mubr.bf16.mxu0 0
        %1125 = vmatmul.mubr.bf16.gmra.mxu0 %v1087
        %v1126 = vpop.f32.mrf.mxu0
        %v1127 = vadd.f32 %v1084, %v1126
        %v1128 = vpop.f32.mrf.mxu0
        %v1129 = vpop.f32.mrf.mxu0
        %v1130 = vpop.f32.mrf.mxu0
        %1131 = vdwg.mxu0
        %v1132 = vrcp.pop %v1074
        %v1133 = vmul.f32 %v1127, %v1132
        %v1134 = vpack.c.bf16 %v1133, %v1133
        %v1136 = vunpack.c.l.b16 %v1134
        %v1137 = vpack.c.b16 %v1136, %v1136
        %1138 = vrot.lane.b32.xlu0 %v1137, 8
        %v1139 = vpop.permute.xlu0 %1138
        %vm1141 = vcmask 126016
        %1142 = vst.msk [vmem:[#allocation6] sm:$0xf] %vm1141, %v1139
        %1143 = vrot.lane.b32.xlu0 %v866, 112
        %v1144 = vpop.permute.xlu0 %1143
        %1145 = vrot.lane.b32.xlu0 %v1005, 112
        %v1146 = vpop.permute.xlu0 %1145
        %v1148 = vsel %vm878, %v1144, 0
        %v1151 = vsel %vm878, %v1146, 0
        %1153 = vmatprep.subr.bf16.mxu0 0
        %1154 = vmatpush1.bf16.xpose.msra.mxu0 0
        %1155 = vmatprep.subr.bf16.mxu0 0
        %1156 = vmatpush1.bf16.xpose.msra.mxu0 0
        %1157 = vmatprep.subr.bf16.mxu0 0
        %1158 = vmatpush1.bf16.xpose.msra.mxu0 0
        %1159 = vmatprep.subr.bf16.mxu0 0
        %1160 = vmatpush1.bf16.xpose.msra.mxu0 0
        %1161 = vmatprep.subr.bf16.mxu0 0
        %1162 = vmatpush1.bf16.xpose.msra.mxu0 0
        %1163 = vmatprep.subr.bf16.mxu0 0
        %1164 = vmatpush1.bf16.xpose.msra.mxu0 0
        %1165 = vmatprep.subr.bf16.mxu0 0
        %1166 = vmatpush1.bf16.xpose.msra.mxu0 0
        %1167 = vmatprep.subr.bf16.mxu0 0
        %1168 = vmatpush1.bf16.xpose.msra.mxu0 %v1151
        %1169 = vmatprep.subr.bf16.mxu0 0
        %1170 = vmatpush2.bf16.xpose.msra.mxu0 0
        %1171 = vmatprep.subr.bf16.mxu0 0
        %1172 = vmatpush2.bf16.xpose.msra.mxu0 0
        %1173 = vmatprep.subr.bf16.mxu0 0
        %1174 = vmatpush2.bf16.xpose.msra.mxu0 0
        %1175 = vmatprep.subr.bf16.mxu0 0
        %1176 = vmatpush2.bf16.xpose.msra.mxu0 0
        %1177 = vmatprep.subr.bf16.mxu0 0
        %1178 = vmatpush2.bf16.xpose.msra.mxu0 0
        %1179 = vmatprep.subr.bf16.mxu0 0
        %1180 = vmatpush2.bf16.xpose.msra.mxu0 0
        %1181 = vmatprep.subr.bf16.mxu0 0
        %1182 = vmatpush2.bf16.xpose.msra.mxu0 0
        %1183 = vmatprep.subr.bf16.mxu0 0
        %1184 = vmatpush2.bf16.xpose.msra.mxu0 0
        %1185 = vmatprep.mubr.bf16.mxu0 0
        %1186 = vmatmul.mubr.bf16.gmra.mxu0 %v1148
        %v1187 = vpop.f32.mrf.mxu0
        %v1188 = vadd.f32 0.0, %v1187
        %v1189 = vpop.f32.mrf.mxu0
        %v1190 = vpop.f32.mrf.mxu0
        %v1191 = vpop.f32.mrf.mxu0
        %1192 = vdwg.mxu0
        %1193 = vrot.lane.b32.xlu0 %v877, 112
        %v1194 = vpop.permute.xlu0 %1193
        %v1196 = vsel %vm878, %v1194, 0.0
        %1197 = vadd.xlane.f32.xlu0 %v1196
        %v1198 = vpop.xlane.xlu0 %1197
        %v1199 = vsel %vm878, %v1188, -inf
        %1200 = vmax.xlane.f32.xlu0 %v1199
        %v1201 = vpop.xlane.xlu0 %1200
        %v1202 = vmax.f32 %v1201, %v1198
        %v1203 = vsub.f32 %v1188, %v1202
        %v1204 = vmul.f32 %v1203, 1.442695
        %v1205 = vpow.pop %v1204
        %v1206 = vsub.f32 %v1198, %v1202
        %v1207 = vmul.f32 %v1206, 1.442695
        %v1208 = vpow.pop %v1207
        %v1209 = vsel %vm878, %v1205, 0.0
        %1210 = vadd.xlane.f32.xlu0 %v1209
        %v1211 = vpop.xlane.xlu0 %1210
        %v1212 = vadd.f32 %v1211, %v1208
        %v1213 = vpack.c.bf16 %v1205, %v1205
        %v1214 = vmul.f32 %v1208, %v946
        %1215 = vrot.lane.b32.xlu0 %v1079, 112
        %v1216 = vpop.permute.xlu0 %1215
        %1218 = vrot.lane.b32.xlu0 %v1214, 112
        %v1219 = vpop.permute.xlu0 %1218
        %v1222 = vsel %vm878, %v1213, 0
        %v1225 = vsel %vm951, %v1216, 0
        %1227 = vmatprep.subr.bf16.mxu0 0
        %1228 = vmatpush1.bf16.msra.mxu0 0
        %1229 = vmatprep.subr.bf16.mxu0 0
        %1230 = vmatpush1.bf16.msra.mxu0 0
        %1231 = vmatprep.subr.bf16.mxu0 0
        %1232 = vmatpush1.bf16.msra.mxu0 0
        %1233 = vmatprep.subr.bf16.mxu0 0
        %1234 = vmatpush1.bf16.msra.mxu0 0
        %1235 = vmatprep.subr.bf16.mxu0 0
        %1236 = vmatpush1.bf16.msra.mxu0 0
        %1237 = vmatprep.subr.bf16.mxu0 0
        %1238 = vmatpush1.bf16.msra.mxu0 0
        %1239 = vmatprep.subr.bf16.mxu0 0
        %1240 = vmatpush1.bf16.msra.mxu0 0
        %1241 = vmatprep.subr.bf16.mxu0 0
        %1242 = vmatpush1.bf16.msra.mxu0 %v1225
        %1243 = vmatprep.subr.bf16.mxu0 0
        %1244 = vmatpush2.bf16.msra.mxu0 0
        %1245 = vmatprep.subr.bf16.mxu0 0
        %1246 = vmatpush2.bf16.msra.mxu0 0
        %1247 = vmatprep.subr.bf16.mxu0 0
        %1248 = vmatpush2.bf16.msra.mxu0 0
        %1249 = vmatprep.subr.bf16.mxu0 0
        %1250 = vmatpush2.bf16.msra.mxu0 0
        %1251 = vmatprep.subr.bf16.mxu0 0
        %1252 = vmatpush2.bf16.msra.mxu0 0
        %1253 = vmatprep.subr.bf16.mxu0 0
        %1254 = vmatpush2.bf16.msra.mxu0 0
        %1255 = vmatprep.subr.bf16.mxu0 0
        %1256 = vmatpush2.bf16.msra.mxu0 0
        %1257 = vmatprep.subr.bf16.mxu0 0
        %1258 = vmatpush2.bf16.msra.mxu0 0
        %1259 = vmatprep.mubr.bf16.mxu0 0
        %1260 = vmatmul.mubr.bf16.gmra.mxu0 %v1222
        %v1261 = vpop.f32.mrf.mxu0
        %v1262 = vadd.f32 %v1219, %v1261
        %v1263 = vpop.f32.mrf.mxu0
        %v1264 = vpop.f32.mrf.mxu0
        %v1265 = vpop.f32.mrf.mxu0
        %1266 = vdwg.mxu0
        %v1267 = vrcp.pop %v1212
        %v1268 = vmul.f32 %v1262, %v1267
        %v1269 = vpack.c.bf16 %v1268, %v1268
        %v1271 = vunpack.c.l.b16 %v1269
        %v1272 = vpack.c.b16 %v1271, %v1271
        %1273 = vrot.lane.b32.xlu0 %v1272, 16
        %v1274 = vpop.permute.xlu0 %1273
        %vm1276 = vcmask 191616
        %1277 = vst.msk [vmem:[#allocation6] sm:$0xf] %vm1276, %v1274
        %1278 = vrot.lane.b32.xlu0 %v866, 104
        %v1279 = vpop.permute.xlu0 %1278
        %1280 = vrot.lane.b32.xlu0 %v1005, 104
        %v1281 = vpop.permute.xlu0 %1280
        %v1283 = vsel %vm878, %v1279, 0
        %v1286 = vsel %vm878, %v1281, 0
        %1288 = vmatprep.subr.bf16.mxu0 0
        %1289 = vmatpush1.bf16.xpose.msra.mxu0 0
        %1290 = vmatprep.subr.bf16.mxu0 0
        %1291 = vmatpush1.bf16.xpose.msra.mxu0 0
        %1292 = vmatprep.subr.bf16.mxu0 0
        %1293 = vmatpush1.bf16.xpose.msra.mxu0 0
        %1294 = vmatprep.subr.bf16.mxu0 0
        %1295 = vmatpush1.bf16.xpose.msra.mxu0 0
        %1296 = vmatprep.subr.bf16.mxu0 0
        %1297 = vmatpush1.bf16.xpose.msra.mxu0 0
        %1298 = vmatprep.subr.bf16.mxu0 0
        %1299 = vmatpush1.bf16.xpose.msra.mxu0 0
        %1300 = vmatprep.subr.bf16.mxu0 0
        %1301 = vmatpush1.bf16.xpose.msra.mxu0 0
        %1302 = vmatprep.subr.bf16.mxu0 0
        %1303 = vmatpush1.bf16.xpose.msra.mxu0 %v1286
        %1304 = vmatprep.subr.bf16.mxu0 0
        %1305 = vmatpush2.bf16.xpose.msra.mxu0 0
        %1306 = vmatprep.subr.bf16.mxu0 0
        %1307 = vmatpush2.bf16.xpose.msra.mxu0 0
        %1308 = vmatprep.subr.bf16.mxu0 0
        %1309 = vmatpush2.bf16.xpose.msra.mxu0 0
        %1310 = vmatprep.subr.bf16.mxu0 0
        %1311 = vmatpush2.bf16.xpose.msra.mxu0 0
        %1312 = vmatprep.subr.bf16.mxu0 0
        %1313 = vmatpush2.bf16.xpose.msra.mxu0 0
        %1314 = vmatprep.subr.bf16.mxu0 0
        %1315 = vmatpush2.bf16.xpose.msra.mxu0 0
        %1316 = vmatprep.subr.bf16.mxu0 0
        %1317 = vmatpush2.bf16.xpose.msra.mxu0 0
        %1318 = vmatprep.subr.bf16.mxu0 0
        %1319 = vmatpush2.bf16.xpose.msra.mxu0 0
        %1320 = vmatprep.mubr.bf16.mxu0 0
        %1321 = vmatmul.mubr.bf16.gmra.mxu0 %v1283
        %v1322 = vpop.f32.mrf.mxu0
        %v1323 = vadd.f32 0.0, %v1322
        %v1324 = vpop.f32.mrf.mxu0
        %v1325 = vpop.f32.mrf.mxu0
        %v1326 = vpop.f32.mrf.mxu0
        %1327 = vdwg.mxu0
        %1328 = vrot.lane.b32.xlu0 %v877, 104
        %v1329 = vpop.permute.xlu0 %1328
        %v1331 = vsel %vm878, %v1329, 0.0
        %1332 = vadd.xlane.f32.xlu0 %v1331
        %v1333 = vpop.xlane.xlu0 %1332
        %v1334 = vsel %vm878, %v1323, -inf
        %1335 = vmax.xlane.f32.xlu0 %v1334
        %v1336 = vpop.xlane.xlu0 %1335
        %v1337 = vmax.f32 %v1336, %v1333
        %v1338 = vsub.f32 %v1323, %v1337
        %v1339 = vmul.f32 %v1338, 1.442695
        %v1340 = vpow.pop %v1339
        %v1341 = vsub.f32 %v1333, %v1337
        %v1342 = vmul.f32 %v1341, 1.442695
        %v1343 = vpow.pop %v1342
        %v1344 = vsel %vm878, %v1340, 0.0
        %1345 = vadd.xlane.f32.xlu0 %v1344
        %v1346 = vpop.xlane.xlu0 %1345
        %v1347 = vadd.f32 %v1346, %v1343
        %v1348 = vpack.c.bf16 %v1340, %v1340
        %v1349 = vmul.f32 %v1343, %v946
        %1350 = vrot.lane.b32.xlu0 %v1079, 104
        %v1351 = vpop.permute.xlu0 %1350
        %1353 = vrot.lane.b32.xlu0 %v1349, 104
        %v1354 = vpop.permute.xlu0 %1353
        %v1357 = vsel %vm878, %v1348, 0
        %v1360 = vsel %vm951, %v1351, 0
        %1362 = vmatprep.subr.bf16.mxu0 0
        %1363 = vmatpush1.bf16.msra.mxu0 0
        %1364 = vmatprep.subr.bf16.mxu0 0
        %1365 = vmatpush1.bf16.msra.mxu0 0
        %1366 = vmatprep.subr.bf16.mxu0 0
        %1367 = vmatpush1.bf16.msra.mxu0 0
        %1368 = vmatprep.subr.bf16.mxu0 0
        %1369 = vmatpush1.bf16.msra.mxu0 0
        %1370 = vmatprep.subr.bf16.mxu0 0
        %1371 = vmatpush1.bf16.msra.mxu0 0
        %1372 = vmatprep.subr.bf16.mxu0 0
        %1373 = vmatpush1.bf16.msra.mxu0 0
        %1374 = vmatprep.subr.bf16.mxu0 0
        %1375 = vmatpush1.bf16.msra.mxu0 0
        %1376 = vmatprep.subr.bf16.mxu0 0
        %1377 = vmatpush1.bf16.msra.mxu0 %v1360
        %1378 = vmatprep.subr.bf16.mxu0 0
        %1379 = vmatpush2.bf16.msra.mxu0 0
        %1380 = vmatprep.subr.bf16.mxu0 0
        %1381 = vmatpush2.bf16.msra.mxu0 0
        %1382 = vmatprep.subr.bf16.mxu0 0
        %1383 = vmatpush2.bf16.msra.mxu0 0
        %1384 = vmatprep.subr.bf16.mxu0 0
        %1385 = vmatpush2.bf16.msra.mxu0 0
        %1386 = vmatprep.subr.bf16.mxu0 0
        %1387 = vmatpush2.bf16.msra.mxu0 0
        %1388 = vmatprep.subr.bf16.mxu0 0
        %1389 = vmatpush2.bf16.msra.mxu0 0
        %1390 = vmatprep.subr.bf16.mxu0 0
        %1391 = vmatpush2.bf16.msra.mxu0 0
        %1392 = vmatprep.subr.bf16.mxu0 0
        %1393 = vmatpush2.bf16.msra.mxu0 0
        %1394 = vmatprep.mubr.bf16.mxu0 0
        %1395 = vmatmul.mubr.bf16.gmra.mxu0 %v1357
        %v1396 = vpop.f32.mrf.mxu0
        %v1397 = vadd.f32 %v1354, %v1396
        %v1398 = vpop.f32.mrf.mxu0
        %v1399 = vpop.f32.mrf.mxu0
        %v1400 = vpop.f32.mrf.mxu0
        %1401 = vdwg.mxu0
        %v1402 = vrcp.pop %v1347
        %v1403 = vmul.f32 %v1397, %v1402
        %v1404 = vpack.c.bf16 %v1403, %v1403
        %v1406 = vunpack.c.l.b16 %v1404
        %v1407 = vpack.c.b16 %v1406, %v1406
        %1408 = vrot.lane.b32.xlu0 %v1407, 24
        %v1409 = vpop.permute.xlu0 %1408
        %vm1411 = vcmask 257216
        %1412 = vst.msk [vmem:[#allocation6] sm:$0xf] %vm1411, %v1409
        %v1413 = vld [vmem:[#allocation6] sm:$0xf]
        %v1414 = vld [vmem:[#allocation21] sm:$0xf]
        %v1415 = vld [vmem:[#allocation21 + $0x4] sm:$0xf]
        %v1416 = vld [vmem:[#allocation21 + $0x8] sm:$0xf]
        %v1417 = vld [vmem:[#allocation21 + $0xc] sm:$0xf]
        %v1418 = vld [vmem:[%s9] sm:$0x1]
        %v1420 = vlaneseq
        %v1421 = vshrl.u32 %v1420, 7
        %v1422 = vsub.s32 0, %v1421
        %v1423 = vrot.slane %v1418, %v1422
        %v1429 = vunpack.c.l.b16 %v1414
        %v1430 = vunpack.c.l.b16 %v1415
        %v1431 = vunpack.c.l.b16 %v1416
        %v1432 = vunpack.c.l.b16 %v1417
        %v1433 = vpack.c.b16 %v1430, %v1429
        %v1434 = vpack.c.b16 %v1432, %v1431
        %v1438 = vsel %vm821, %v1413, 0
        %1440 = vmatprep.subr.bf16.mxu0 0
        %1441 = vmatpush1.bf16.msra.mxu0 0
        %1442 = vmatprep.subr.bf16.mxu0 0
        %1443 = vmatpush1.bf16.msra.mxu0 0
        %1444 = vmatprep.subr.bf16.mxu0 0
        %1445 = vmatpush1.bf16.msra.mxu0 0
        %1446 = vmatprep.subr.bf16.mxu0 0
        %1447 = vmatpush1.bf16.msra.mxu0 0
        %1448 = vmatprep.subr.bf16.mxu0 0
        %1449 = vmatpush1.bf16.msra.mxu0 0
        %1450 = vmatprep.subr.bf16.mxu0 0
        %1451 = vmatpush1.bf16.msra.mxu0 0
        %1452 = vmatprep.subr.bf16.mxu0 0
        %1453 = vmatpush1.bf16.msra.mxu0 %v1434
        %1454 = vmatprep.subr.bf16.mxu0 0
        %1455 = vmatpush1.bf16.msra.mxu0 %v1433
        %1456 = vmatprep.subr.bf16.mxu0 0
        %1457 = vmatpush2.bf16.msra.mxu0 0
        %1458 = vmatprep.subr.bf16.mxu0 0
        %1459 = vmatpush2.bf16.msra.mxu0 0
        %1460 = vmatprep.subr.bf16.mxu0 0
        %1461 = vmatpush2.bf16.msra.mxu0 0
        %1462 = vmatprep.subr.bf16.mxu0 0
        %1463 = vmatpush2.bf16.msra.mxu0 0
        %1464 = vmatprep.subr.bf16.mxu0 0
        %1465 = vmatpush2.bf16.msra.mxu0 0
        %1466 = vmatprep.subr.bf16.mxu0 0
        %1467 = vmatpush2.bf16.msra.mxu0 0
        %1468 = vmatprep.subr.bf16.mxu0 0
        %1469 = vmatpush2.bf16.msra.mxu0 0
        %1470 = vmatprep.subr.bf16.mxu0 0
        %1471 = vmatpush2.bf16.msra.mxu0 0
        %1472 = vmatprep.mubr.bf16.mxu0 0
        %1473 = vmatmul.mubr.bf16.gmra.mxu0 %v1438
        %v1474 = vpop.f32.mrf.mxu0
        %v1475 = vadd.f32 %v1423, %v1474
        %v1476 = vpop.f32.mrf.mxu0
        %v1477 = vpop.f32.mrf.mxu0
        %v1478 = vpop.f32.mrf.mxu0
        %1479 = vdwg.mxu0
        %1480 = vst.msk [vmem:[%s546] sm:$0xff] %vm821, %v1475
        %s1481 = sand.u32 %s282, 1
        %s1482 = scalar_lea.sflag [#allocation9], %s1481
        %s1483 = sand.u32 %s282, 1
        %s1484 = smul.addr %s1483, 8
        %s1485 = scalar_lea.vmem [#allocation22], %s1484
        // Predicated region
        $region101: #{tpu_custom_call.1} parent=59 // pred_check
          %p1486 = pneg %p292
        $region102: #{tpu_custom_call.1} parent=59 // pred_check_branch
          %1488 = sbr.rel (%p1486) target = $region104
        $region103: #{tpu_custom_call.1} parent=59 // pred_region
          %s1490 = ssub.s32 128, 128
          %1491 = vsyncadd %s1482, %s1490
          %s1492 = sadd.s32 %s38, %s37
          %s1493 = smul.addr %s1492, 128
          %s1494 = scalar_lea.hbm %s10, %s1493
          %s1496 = sshll.u32 %s1485, 4
          %s1497 = int_to_ptr.vmem [resolvable:$true] %s1496
          %1499 = dma.vmem_to_hbm [thread:$0]  %s1497, 128, %s1494, %s1482
        $region104: #{tpu_custom_call.1} parent=59 // pred_fallthru
          _
      $region60: #{tpu_custom_call.1} parent=5 // pred_fallthru
        _
      %p1500 = scmp.le.s32.totalorder 2, %s28
      // Predicated region
      $region105: #{tpu_custom_call.1} parent=5 // pred_check
        %p1501 = pneg %p1500
      $region106: #{tpu_custom_call.1} parent=5 // pred_check_branch
        %1503 = sbr.rel (%p1501) target = $region108
      $region107: #{tpu_custom_call.1} parent=5 // pred_region
        %s1504 = ssub.s32 %s28, 2
        // Predicated region
        $region109: #{tpu_custom_call.1} parent=107 // pred_check
          %p1505 = pneg %p298
        $region110: #{tpu_custom_call.1} parent=107 // pred_check_branch
          %1507 = sbr.rel (%p1505) target = $region112
        $region111: #{tpu_custom_call.1} parent=107 // pred_region
          %s1508 = sand.u32 %s283, 1
          %s1509 = scalar_lea.sflag [#allocation9], %s1508
          %s1510 = sand.u32 %s283, 1
          %s1511 = smul.addr %s1510, 8
          %s1512 = scalar_lea.vmem [#allocation22], %s1511
          %1513 = dma.done %s1509, 128
        $region112: #{tpu_custom_call.1} parent=107 // pred_fallthru
          _
      $region108: #{tpu_custom_call.1} parent=5 // pred_fallthru
        _
    $region6: #{tpu_custom_call.1} parent=1 // loop_footer
      %s32 = sadd.s32 1, %s28
    $region7: #{tpu_custom_call.1} parent=1 // loop_footer_branch
      %27 = sbr.rel target = $region3
    $region8: #{tpu_custom_call.1} parent=1 // loop_exit
      _
    %1514 = vsyncpa [#allocation8], 1
    %s1515 = scalar_lea.sflag [#allocation8], 1
    %1516 = vsyncpa %s1515, 1
    %1517 = vsyncpa [#allocation11], 1
    %s1518 = scalar_lea.sflag [#allocation11], 1
    %1519 = vsyncpa %s1518, 1
    %1520 = vsyncpa [#allocation14], 1
    %1521 = vsyncpa [#allocation17], 1
    %1522 = vsyncpa [#allocation20], 1
    %1523 = vsyncpa [#allocation9], 1
    %s1524 = scalar_lea.sflag [#allocation9], 1
    %1525 = vsyncpa %s1524, 1

</llo_original>
